<compile_context>
chip_gen: v7x
topology: tpu7x:2x2x1
jax: 0.10.0
libtpu: 0.0.40
codegen_flags: <defaults>
</compile_context>

<pallas_src>
import functools
import math

import jax
import jax.numpy as jnp
from jax import lax
from jax.experimental import pallas as pl
from jax.experimental.pallas import tpu as pltpu

D_MODEL = 32
N_HEAD = 4
DIM_FF = 64
EPS = 1e-5  # nn.LayerNorm default


def _gelu_exact(x):
    # nn.GELU() default (erf-based, not the tanh approximation)
    return 0.5 * x * (1.0 + lax.erf(x * (1.0 / math.sqrt(2.0))))


def fusion_kernel(traj_ref, ctx_ref,
                  segln_ref, segat_ref,
                  g1_ref, be1_ref,
                  wq_ref, bq_ref,
                  wkv_ref, bkv_ref,
                  wo_ref, bo_ref,
                  g2_ref, be2_ref,
                  w1_ref, bf1_ref,
                  w2_ref, bf2_ref,
                  out_ref,
                  *, head_dim):
    bt, L, Dp = traj_ref.shape            # lane-packed: Dp = pack * d_model
    _, nc, _ = ctx_ref.shape
    f32 = jnp.float32

    traj = traj_ref[...].reshape(bt * L, Dp)
    ctx = ctx_ref[...].reshape(bt * nc, Dp)

    segln = segln_ref[...]                # (Dp, Dp) per-slot mean matrix (1/D folded in)
    segat = segat_ref[...]                # (Dp, Dp) per-(slot, head) segment-sum matrix

    def slot_layer_norm(x, gamma, beta):
        # Per-32-lane-slot LayerNorm; segment reductions as MXU matmuls.
        mu = jnp.dot(x, segln, preferred_element_type=f32)
        xc = x - mu
        var = jnp.dot(xc * xc, segln, preferred_element_type=f32)
        return xc * lax.rsqrt(var + EPS) * gamma + beta

    # ---- 1) Cross-attention (pre-norm on the query path only) ----
    qn = slot_layer_norm(traj, g1_ref[...], be1_ref[...])
    scale = 1.0 / math.sqrt(head_dim)
    q = (jnp.dot(qn, wq_ref[...], preferred_element_type=f32) + bq_ref[...]) * scale
    kv = jnp.dot(ctx, wkv_ref[...], preferred_element_type=f32) + bkv_ref[...]
    k = kv[:, :Dp]
    v = kv[:, Dp:]

    q4 = q.reshape(bt, 1, L, Dp)          # broadcast over keys
    k4 = k.reshape(bt, nc, 1, Dp)         # broadcast over queries
    v4 = v.reshape(bt, nc, 1, Dp)

    # Scores for every (packed slot, head): elementwise q*k product followed by
    # a segment-sum matmul; the result is replicated across each head's lanes.
    qk = q4 * k4                           # (bt, nc, L, Dp)
    s = jnp.dot(qk.reshape(bt * nc * L, Dp), segat,
                preferred_element_type=f32).reshape(bt, nc, L, Dp)

    # Softmax over the key axis (a leading dim) -> true per-(slot, head) max.
    m = jnp.max(s, axis=1, keepdims=True)
    e = jnp.exp(s - m)
    den = jnp.sum(e, axis=1, keepdims=True)           # >= 1 by construction
    r = pl.reciprocal(den, approx=True)
    r = r * (2.0 - den * r)                           # one Newton step -> ~f32 accuracy
    p = e * r

    # Attention-weighted V, then Wo applied once to bt*L rows (reassociated).
    o = jnp.sum(p * v4, axis=1).reshape(bt * L, Dp)
    attn = jnp.dot(o, wo_ref[...], preferred_element_type=f32) + bo_ref[...]

    x = traj + attn

    # ---- 2) Position-wise FFN (pre-norm; dropout = identity) ----
    xn = slot_layer_norm(x, g2_ref[...], be2_ref[...])
    h1 = _gelu_exact(jnp.dot(xn, w1_ref[...], preferred_element_type=f32) + bf1_ref[...])
    y = jnp.dot(h1, w2_ref[...], preferred_element_type=f32) + bf2_ref[...]

    out_ref[...] = (x + y).reshape(bt, L, Dp).astype(out_ref.dtype)


def _largest_divisor_leq(n, cap):
    best = 1
    for c in range(1, min(n, cap) + 1):
        if n % c == 0:
            best = c
    return best


def _pick_block_b(Bq, L, Nc, Dp, itemsize=4, budget=24 * 1024 * 1024):
    # Target ~1024 traj rows per grid step (amortizes ~0.35us step overhead,
    # keeps MXU operands tall) while keeping the (bt, Nc, L, Dp) score-sized
    # intermediates within a VMEM budget.  bt divides Bq so no padding is ever
    # needed, and there is no forced 2-way split (single-TC v5e/v6e gains
    # nothing from it; on v7x megacore only helps once each step has real work).
    per_b = (6 * Nc * L * Dp + 8 * L * Dp) * itemsize
    cap = min(max(1, 1024 // max(L, 1)), max(1, budget // max(per_b, 1)))
    return _largest_divisor_leq(Bq, cap)


def fusion_layer(traj, context, params):
    """params: dict of (in, out)-layout weights / (1, n) biases (see __main__)."""
    B, L, D = traj.shape
    _, Nc, _ = context.shape
    F = params["w1"].shape[1]
    hd = D // N_HEAD
    f32 = jnp.float32

    # ---- batch -> lane packing ------------------------------------------------
    # Interleave P batch elements into the minor (lane) dim so the feature axis
    # becomes 128 lanes wide; weights become block-diagonal per packed slot.
    # TODO(synk): on v6e/v7x an 8-way (256-lane) packing would fill the 256-wide
    # MXU; kept at <=128 lanes for portability to v5e's 128-wide MXU.
    P = _largest_divisor_leq(B, max(1, 128 // D))
    Dp, Bq = P * D, B // P

    traj_p = traj.reshape(Bq, P, L, D).transpose(0, 2, 1, 3).reshape(Bq, L, Dp)
    ctx_p = context.reshape(Bq, P, Nc, D).transpose(0, 2, 1, 3).reshape(Bq, Nc, Dp)

    # ---- constant operands (built once in the wrapper, resident in VMEM) ------
    eye_p = jnp.eye(P, dtype=f32)

    def block_diag(w):
        return jnp.kron(eye_p, w.astype(f32))

    def tile_rowvec(b):
        return jnp.tile(b.astype(f32).reshape(1, -1), (1, P))

    lane = jnp.arange(Dp)
    segln = (lane[:, None] // D == lane[None, :] // D).astype(f32) / D
    segat = (lane[:, None] // hd == lane[None, :] // hd).astype(f32)

    wkv_bd = jnp.concatenate([block_diag(params["wk"]), block_diag(params["wv"])], axis=1)
    bkv_t = jnp.concatenate([tile_rowvec(params["bk"]), tile_rowvec(params["bv"])], axis=1)

    # TODO(synk): bf16 matmul operands (~3x MXU on v6e/v7x, half the VMEM/HBM
    # traffic) not adopted: the 2e-4 f32 check below would need re-validation.
    consts = [
        segln, segat,
        tile_rowvec(params["g1"]), tile_rowvec(params["be1"]),
        block_diag(params["wq"]), tile_rowvec(params["bq"]),
        wkv_bd, bkv_t,
        block_diag(params["wo"]), tile_rowvec(params["bo"]),
        tile_rowvec(params["g2"]), tile_rowvec(params["be2"]),
        block_diag(params["w1"]), tile_rowvec(params["bf1"]),
        block_diag(params["w2"]), tile_rowvec(params["bf2"]),
    ]

    bt = _pick_block_b(Bq, L, Nc, Dp)
    grid = Bq // bt

    in_specs = [
        pl.BlockSpec((bt, L, Dp), lambda b: (b, 0, 0)),
        pl.BlockSpec((bt, Nc, Dp), lambda b: (b, 0, 0)),
    ]
    for c in consts:
        in_specs.append(pl.BlockSpec(c.shape, lambda b, nd=c.ndim: (0,) * nd))

    out_p = pl.pallas_call(
        functools.partial(fusion_kernel, head_dim=hd),
        out_shape=jax.ShapeDtypeStruct((Bq, L, Dp), traj.dtype),
        grid_spec=pltpu.PrefetchScalarGridSpec(
            num_scalar_prefetch=0,
            grid=(grid,),
            in_specs=in_specs,
            out_specs=pl.BlockSpec((bt, L, Dp), lambda b: (b, 0, 0)),
        ),
        compiler_params=pltpu.CompilerParams(
            dimension_semantics=("parallel",),
            vmem_limit_bytes=48 * 1024 * 1024,
        ),
    )(traj_p, ctx_p, *consts)

    # ---- unpack lanes -> batch -------------------------------------------------
    return out_p.reshape(Bq, L, P, D).transpose(0, 2, 1, 3).reshape(B, L, D)


def reference(traj, context, p):
    """Pure-JAX reference mirroring the PyTorch forward (eval mode)."""
    B, L, D = traj.shape
    Nc = context.shape[1]
    hd = D // N_HEAD

    def ln(x, g, b):
        mu = x.mean(-1, keepdims=True)
        var = ((x - mu) ** 2).mean(-1, keepdims=True)
        return (x - mu) / jnp.sqrt(var + EPS) * g + b

    q = ln(traj, p["g1"], p["be1"]) @ p["wq"] + p["bq"]
    k = context @ p["wk"] + p["bk"]
    v = context @ p["wv"] + p["bv"]
    qh = q.reshape(B, L, N_HEAD, hd).transpose(0, 2, 1, 3)
    kh = k.reshape(B, Nc, N_HEAD, hd).transpose(0, 2, 1, 3)
    vh = v.reshape(B, Nc, N_HEAD, hd).transpose(0, 2, 1, 3)
    s = jnp.einsum("bhld,bhnd->bhln", qh, kh) / math.sqrt(hd)
    a = jax.nn.softmax(s, axis=-1)
    o = jnp.einsum("bhln,bhnd->bhld", a, vh).transpose(0, 2, 1, 3).reshape(B, L, D)
    attn = o @ p["wo"] + p["bo"]
    x = traj + attn
    xn = ln(x, p["g2"], p["be2"])
    h = xn @ p["w1"] + p["bf1"]
    h = 0.5 * h * (1.0 + jax.lax.erf(h / jnp.sqrt(2.0)))
    y = h @ p["w2"] + p["bf2"]
    return x + y


if __name__ == "__main__":
    B, L, Nc = 4, 8, 4
    f32 = jnp.float32

    key = jax.random.PRNGKey(0)
    keys = iter(jax.random.split(key, 32))

    traj = jax.random.normal(next(keys), (B, L, D_MODEL), f32)
    context = jax.random.normal(next(keys), (B, Nc, D_MODEL), f32)

    def rnd(shape, scale):
        return jax.random.normal(next(keys), shape, f32) * scale

    s_d = 1.0 / math.sqrt(D_MODEL)
    s_f = 1.0 / math.sqrt(DIM_FF)

    # Weights stored pre-transposed w.r.t. PyTorch (kernel computes x @ W).
    params = {
        "g1": jnp.ones((1, D_MODEL), f32),          # LayerNorm default init
        "be1": jnp.zeros((1, D_MODEL), f32),
        "wq": rnd((D_MODEL, D_MODEL), s_d), "bq": rnd((1, D_MODEL), s_d),
        "wk": rnd((D_MODEL, D_MODEL), s_d), "bk": rnd((1, D_MODEL), s_d),
        "wv": rnd((D_MODEL, D_MODEL), s_d), "bv": rnd((1, D_MODEL), s_d),
        "wo": rnd((D_MODEL, D_MODEL), s_d), "bo": rnd((1, D_MODEL), s_d),
        "g2": jnp.ones((1, D_MODEL), f32),
        "be2": jnp.zeros((1, D_MODEL), f32),
        "w1": rnd((D_MODEL, DIM_FF), s_d), "bf1": rnd((1, DIM_FF), s_d),
        "w2": rnd((DIM_FF, D_MODEL), s_f), "bf2": rnd((1, D_MODEL), s_f),
    }
    # TODO(synk): dropout layers are identity here (inference/eval mode).

    out = fusion_layer(traj, context, params)
    out = jax.block_until_ready(out)

    ref = jax.block_until_ready(reference(traj, context, params))
    assert out.shape == (B, L, D_MODEL)
    assert jnp.allclose(out, ref, atol=2e-4, rtol=2e-4), \
        f"max abs diff = {jnp.max(jnp.abs(out - ref))}"

    print("KERNEL_OK")
</pallas_src>

<mosaic_0001>
module attributes {stable_mosaic.version = 11 : i64} {
  func.func @fusion_kernel(%arg0: i32, %arg1: memref<1x8x128xf32, #tpu.memory_space<vmem>>, %arg2: memref<1x4x128xf32, #tpu.memory_space<vmem>>, %arg3: memref<128x128xf32, #tpu.memory_space<vmem>>, %arg4: memref<128x128xf32, #tpu.memory_space<vmem>>, %arg5: memref<1x128xf32, #tpu.memory_space<vmem>>, %arg6: memref<1x128xf32, #tpu.memory_space<vmem>>, %arg7: memref<128x128xf32, #tpu.memory_space<vmem>>, %arg8: memref<1x128xf32, #tpu.memory_space<vmem>>, %arg9: memref<128x256xf32, #tpu.memory_space<vmem>>, %arg10: memref<1x256xf32, #tpu.memory_space<vmem>>, %arg11: memref<128x128xf32, #tpu.memory_space<vmem>>, %arg12: memref<1x128xf32, #tpu.memory_space<vmem>>, %arg13: memref<1x128xf32, #tpu.memory_space<vmem>>, %arg14: memref<1x128xf32, #tpu.memory_space<vmem>>, %arg15: memref<128x256xf32, #tpu.memory_space<vmem>>, %arg16: memref<1x256xf32, #tpu.memory_space<vmem>>, %arg17: memref<256x128xf32, #tpu.memory_space<vmem>>, %arg18: memref<1x128xf32, #tpu.memory_space<vmem>>, %arg19: memref<1x8x128xf32, #tpu.memory_space<vmem>>) attributes {dimension_semantics = [#tpu.dimension_semantics<parallel>], iteration_bounds = array<i64: 1>, scalar_prefetch = 0 : i64, scratch_operands = 0 : i64, tpu.core_type = #tpu.core_type<tc>, window_params = [{transform_indices = @transform_0, window_bounds = array<i64: 1, 8, 128>}, {transform_indices = @transform_1, window_bounds = array<i64: 1, 4, 128>}, {pipeline_mode = #tpu.pipeline_mode<synchronous>, transform_indices = @transform_2, window_bounds = array<i64: 128, 128>}, {pipeline_mode = #tpu.pipeline_mode<synchronous>, transform_indices = @transform_3, window_bounds = array<i64: 128, 128>}, {pipeline_mode = #tpu.pipeline_mode<synchronous>, transform_indices = @transform_4, window_bounds = array<i64: 1, 128>}, {pipeline_mode = #tpu.pipeline_mode<synchronous>, transform_indices = @transform_5, window_bounds = array<i64: 1, 128>}, {pipeline_mode = #tpu.pipeline_mode<synchronous>, transform_indices = @transform_6, window_bounds = array<i64: 128, 128>}, {pipeline_mode = #tpu.pipeline_mode<synchronous>, transform_indices = @transform_7, window_bounds = array<i64: 1, 128>}, {pipeline_mode = #tpu.pipeline_mode<synchronous>, transform_indices = @transform_8, window_bounds = array<i64: 128, 256>}, {pipeline_mode = #tpu.pipeline_mode<synchronous>, transform_indices = @transform_9, window_bounds = array<i64: 1, 256>}, {pipeline_mode = #tpu.pipeline_mode<synchronous>, transform_indices = @transform_10, window_bounds = array<i64: 128, 128>}, {pipeline_mode = #tpu.pipeline_mode<synchronous>, transform_indices = @transform_11, window_bounds = array<i64: 1, 128>}, {pipeline_mode = #tpu.pipeline_mode<synchronous>, transform_indices = @transform_12, window_bounds = array<i64: 1, 128>}, {pipeline_mode = #tpu.pipeline_mode<synchronous>, transform_indices = @transform_13, window_bounds = array<i64: 1, 128>}, {pipeline_mode = #tpu.pipeline_mode<synchronous>, transform_indices = @transform_14, window_bounds = array<i64: 128, 256>}, {pipeline_mode = #tpu.pipeline_mode<synchronous>, transform_indices = @transform_15, window_bounds = array<i64: 1, 256>}, {pipeline_mode = #tpu.pipeline_mode<synchronous>, transform_indices = @transform_16, window_bounds = array<i64: 256, 128>}, {pipeline_mode = #tpu.pipeline_mode<synchronous>, transform_indices = @transform_17, window_bounds = array<i64: 1, 128>}, {transform_indices = @transform_18, window_bounds = array<i64: 1, 8, 128>}]} {
    %c0 = arith.constant 0 : index
    %c0_0 = arith.constant 0 : index
    %c0_1 = arith.constant 0 : index
    %0 = vector.load %arg1[%c0, %c0_0, %c0_1] : memref<1x8x128xf32, #tpu.memory_space<vmem>>, vector<1x8x128xf32>
    %1 = vector.shape_cast %0 : vector<1x8x128xf32> to vector<8x128xf32>
    %c0_2 = arith.constant 0 : index
    %c0_3 = arith.constant 0 : index
    %c0_4 = arith.constant 0 : index
    %2 = vector.load %arg2[%c0_2, %c0_3, %c0_4] : memref<1x4x128xf32, #tpu.memory_space<vmem>>, vector<1x4x128xf32>
    %3 = vector.shape_cast %2 : vector<1x4x128xf32> to vector<4x128xf32>
    %c0_5 = arith.constant 0 : index
    %c0_6 = arith.constant 0 : index
    %4 = vector.load %arg3[%c0_5, %c0_6] : memref<128x128xf32, #tpu.memory_space<vmem>>, vector<128x128xf32>
    %c0_7 = arith.constant 0 : index
    %c0_8 = arith.constant 0 : index
    %5 = vector.load %arg4[%c0_7, %c0_8] : memref<128x128xf32, #tpu.memory_space<vmem>>, vector<128x128xf32>
    %c0_9 = arith.constant 0 : index
    %c0_10 = arith.constant 0 : index
    %6 = vector.load %arg5[%c0_9, %c0_10] : memref<1x128xf32, #tpu.memory_space<vmem>>, vector<1x128xf32>
    %c0_11 = arith.constant 0 : index
    %c0_12 = arith.constant 0 : index
    %7 = vector.load %arg6[%c0_11, %c0_12] : memref<1x128xf32, #tpu.memory_space<vmem>>, vector<1x128xf32>
    %cst = arith.constant dense<0.000000e+00> : vector<8x128xf32>
    %8 = tpu.matmul %1, %4, %cst {dimension_numbers = #tpu.dot_dimension_numbers<[1], [0], [0], [1], [0, 0, 1, 1], [], []>} : vector<8x128xf32>, vector<128x128xf32>, vector<8x128xf32> -> vector<8x128xf32>
    %9 = arith.subf %1, %8 : vector<8x128xf32>
    %10 = arith.mulf %9, %9 : vector<8x128xf32>
    %cst_13 = arith.constant dense<0.000000e+00> : vector<8x128xf32>
    %11 = tpu.matmul %10, %4, %cst_13 {dimension_numbers = #tpu.dot_dimension_numbers<[1], [0], [0], [1], [0, 0, 1, 1], [], []>} : vector<8x128xf32>, vector<128x128xf32>, vector<8x128xf32> -> vector<8x128xf32>
    %cst_14 = arith.constant 9.99999974E-6 : f32
    %12 = vector.broadcast %cst_14 : f32 to vector<8x128xf32>
    %13 = arith.addf %11, %12 : vector<8x128xf32>
    %14 = math.rsqrt %13 : vector<8x128xf32>
    %15 = arith.mulf %9, %14 : vector<8x128xf32>
    %16 = vector.broadcast %6 : vector<1x128xf32> to vector<8x128xf32>
    %17 = arith.mulf %15, %16 : vector<8x128xf32>
    %18 = vector.broadcast %7 : vector<1x128xf32> to vector<8x128xf32>
    %19 = arith.addf %17, %18 : vector<8x128xf32>
    %c0_15 = arith.constant 0 : index
    %c0_16 = arith.constant 0 : index
    %20 = vector.load %arg7[%c0_15, %c0_16] : memref<128x128xf32, #tpu.memory_space<vmem>>, vector<128x128xf32>
    %cst_17 = arith.constant dense<0.000000e+00> : vector<8x128xf32>
    %21 = tpu.matmul %19, %20, %cst_17 {dimension_numbers = #tpu.dot_dimension_numbers<[1], [0], [0], [1], [0, 0, 1, 1], [], []>} : vector<8x128xf32>, vector<128x128xf32>, vector<8x128xf32> -> vector<8x128xf32>
    %c0_18 = arith.constant 0 : index
    %c0_19 = arith.constant 0 : index
    %22 = vector.load %arg8[%c0_18, %c0_19] : memref<1x128xf32, #tpu.memory_space<vmem>>, vector<1x128xf32>
    %23 = vector.broadcast %22 : vector<1x128xf32> to vector<8x128xf32>
    %24 = arith.addf %21, %23 : vector<8x128xf32>
    %cst_20 = arith.constant 0.353553385 : f32
    %25 = vector.broadcast %cst_20 : f32 to vector<8x128xf32>
    %26 = arith.mulf %24, %25 : vector<8x128xf32>
    %c0_21 = arith.constant 0 : index
    %c0_22 = arith.constant 0 : index
    %27 = vector.load %arg9[%c0_21, %c0_22] : memref<128x256xf32, #tpu.memory_space<vmem>>, vector<128x256xf32>
    %cst_23 = arith.constant dense<0.000000e+00> : vector<4x256xf32>
    %28 = tpu.matmul %3, %27, %cst_23 {dimension_numbers = #tpu.dot_dimension_numbers<[1], [0], [0], [1], [0, 0, 1, 1], [], []>} : vector<4x128xf32>, vector<128x256xf32>, vector<4x256xf32> -> vector<4x256xf32>
    %c0_24 = arith.constant 0 : index
    %c0_25 = arith.constant 0 : index
    %29 = vector.load %arg10[%c0_24, %c0_25] : memref<1x256xf32, #tpu.memory_space<vmem>>, vector<1x256xf32>
    %30 = vector.broadcast %29 : vector<1x256xf32> to vector<4x256xf32>
    %31 = arith.addf %28, %30 : vector<4x256xf32>
    %32 = vector.extract_strided_slice %31 {offsets = [0, 0], sizes = [4, 128], strides = [1, 1]} : vector<4x256xf32> to vector<4x128xf32>
    %33 = vector.extract_strided_slice %31 {offsets = [0, 128], sizes = [4, 128], strides = [1, 1]} : vector<4x256xf32> to vector<4x128xf32>
    %34 = vector.shape_cast %26 : vector<8x128xf32> to vector<1x1x8x128xf32>
    %35 = vector.shape_cast %32 : vector<4x128xf32> to vector<1x4x1x128xf32>
    %36 = vector.shape_cast %33 : vector<4x128xf32> to vector<1x4x1x128xf32>
    %37 = vector.broadcast %34 : vector<1x1x8x128xf32> to vector<1x4x8x128xf32>
    %38 = vector.broadcast %35 : vector<1x4x1x128xf32> to vector<1x4x8x128xf32>
    %39 = arith.mulf %37, %38 : vector<1x4x8x128xf32>
    %40 = vector.shape_cast %39 : vector<1x4x8x128xf32> to vector<32x128xf32>
    %cst_26 = arith.constant dense<0.000000e+00> : vector<32x128xf32>
    %41 = tpu.matmul %40, %5, %cst_26 {dimension_numbers = #tpu.dot_dimension_numbers<[1], [0], [0], [1], [0, 0, 1, 1], [], []>} : vector<32x128xf32>, vector<128x128xf32>, vector<32x128xf32> -> vector<32x128xf32>
    %42 = vector.shape_cast %41 : vector<32x128xf32> to vector<1x4x8x128xf32>
    %cst_27 = arith.constant dense<0xFF800000> : vector<1x8x128xf32>
    %43 = vector.multi_reduction <maximumf>, %42, %cst_27 [1] : vector<1x4x8x128xf32> to vector<1x8x128xf32>
    %44 = vector.shape_cast %43 : vector<1x8x128xf32> to vector<1x1x8x128xf32>
    %45 = vector.broadcast %44 : vector<1x1x8x128xf32> to vector<1x4x8x128xf32>
    %46 = arith.subf %42, %45 : vector<1x4x8x128xf32>
    %47 = math.exp %46 : vector<1x4x8x128xf32>
    %cst_28 = arith.constant dense<0.000000e+00> : vector<1x8x128xf32>
    %48 = vector.multi_reduction <add>, %47, %cst_28 [1] : vector<1x4x8x128xf32> to vector<1x8x128xf32>
    %49 = vector.shape_cast %48 : vector<1x8x128xf32> to vector<1x1x8x128xf32>
    %50 = tpu.reciprocal %49 {approx = true} : vector<1x1x8x128xf32> -> vector<1x1x8x128xf32>
    %51 = arith.mulf %49, %50 : vector<1x1x8x128xf32>
    %cst_29 = arith.constant 2.000000e+00 : f32
    %52 = vector.broadcast %cst_29 : f32 to vector<1x1x8x128xf32>
    %53 = arith.subf %52, %51 : vector<1x1x8x128xf32>
    %54 = arith.mulf %50, %53 : vector<1x1x8x128xf32>
    %55 = vector.broadcast %54 : vector<1x1x8x128xf32> to vector<1x4x8x128xf32>
    %56 = arith.mulf %47, %55 : vector<1x4x8x128xf32>
    %57 = vector.broadcast %36 : vector<1x4x1x128xf32> to vector<1x4x8x128xf32>
    %58 = arith.mulf %56, %57 : vector<1x4x8x128xf32>
    %cst_30 = arith.constant dense<0.000000e+00> : vector<1x8x128xf32>
    %59 = vector.multi_reduction <add>, %58, %cst_30 [1] : vector<1x4x8x128xf32> to vector<1x8x128xf32>
    %60 = vector.shape_cast %59 : vector<1x8x128xf32> to vector<8x128xf32>
    %c0_31 = arith.constant 0 : index
    %c0_32 = arith.constant 0 : index
    %61 = vector.load %arg11[%c0_31, %c0_32] : memref<128x128xf32, #tpu.memory_space<vmem>>, vector<128x128xf32>
    %cst_33 = arith.constant dense<0.000000e+00> : vector<8x128xf32>
    %62 = tpu.matmul %60, %61, %cst_33 {dimension_numbers = #tpu.dot_dimension_numbers<[1], [0], [0], [1], [0, 0, 1, 1], [], []>} : vector<8x128xf32>, vector<128x128xf32>, vector<8x128xf32> -> vector<8x128xf32>
    %c0_34 = arith.constant 0 : index
    %c0_35 = arith.constant 0 : index
    %63 = vector.load %arg12[%c0_34, %c0_35] : memref<1x128xf32, #tpu.memory_space<vmem>>, vector<1x128xf32>
    %64 = vector.broadcast %63 : vector<1x128xf32> to vector<8x128xf32>
    %65 = arith.addf %62, %64 : vector<8x128xf32>
    %66 = arith.addf %1, %65 : vector<8x128xf32>
    %c0_36 = arith.constant 0 : index
    %c0_37 = arith.constant 0 : index
    %67 = vector.load %arg13[%c0_36, %c0_37] : memref<1x128xf32, #tpu.memory_space<vmem>>, vector<1x128xf32>
    %c0_38 = arith.constant 0 : index
    %c0_39 = arith.constant 0 : index
    %68 = vector.load %arg14[%c0_38, %c0_39] : memref<1x128xf32, #tpu.memory_space<vmem>>, vector<1x128xf32>
    %cst_40 = arith.constant dense<0.000000e+00> : vector<8x128xf32>
    %69 = tpu.matmul %66, %4, %cst_40 {dimension_numbers = #tpu.dot_dimension_numbers<[1], [0], [0], [1], [0, 0, 1, 1], [], []>} : vector<8x128xf32>, vector<128x128xf32>, vector<8x128xf32> -> vector<8x128xf32>
    %70 = arith.subf %66, %69 : vector<8x128xf32>
    %71 = arith.mulf %70, %70 : vector<8x128xf32>
    %cst_41 = arith.constant dense<0.000000e+00> : vector<8x128xf32>
    %72 = tpu.matmul %71, %4, %cst_41 {dimension_numbers = #tpu.dot_dimension_numbers<[1], [0], [0], [1], [0, 0, 1, 1], [], []>} : vector<8x128xf32>, vector<128x128xf32>, vector<8x128xf32> -> vector<8x128xf32>
    %cst_42 = arith.constant 9.99999974E-6 : f32
    %73 = vector.broadcast %cst_42 : f32 to vector<8x128xf32>
    %74 = arith.addf %72, %73 : vector<8x128xf32>
    %75 = math.rsqrt %74 : vector<8x128xf32>
    %76 = arith.mulf %70, %75 : vector<8x128xf32>
    %77 = vector.broadcast %67 : vector<1x128xf32> to vector<8x128xf32>
    %78 = arith.mulf %76, %77 : vector<8x128xf32>
    %79 = vector.broadcast %68 : vector<1x128xf32> to vector<8x128xf32>
    %80 = arith.addf %78, %79 : vector<8x128xf32>
    %c0_43 = arith.constant 0 : index
    %c0_44 = arith.constant 0 : index
    %81 = vector.load %arg15[%c0_43, %c0_44] : memref<128x256xf32, #tpu.memory_space<vmem>>, vector<128x256xf32>
    %cst_45 = arith.constant dense<0.000000e+00> : vector<8x256xf32>
    %82 = tpu.matmul %80, %81, %cst_45 {dimension_numbers = #tpu.dot_dimension_numbers<[1], [0], [0], [1], [0, 0, 1, 1], [], []>} : vector<8x128xf32>, vector<128x256xf32>, vector<8x256xf32> -> vector<8x256xf32>
    %c0_46 = arith.constant 0 : index
    %c0_47 = arith.constant 0 : index
    %83 = vector.load %arg16[%c0_46, %c0_47] : memref<1x256xf32, #tpu.memory_space<vmem>>, vector<1x256xf32>
    %84 = vector.broadcast %83 : vector<1x256xf32> to vector<8x256xf32>
    %85 = arith.addf %82, %84 : vector<8x256xf32>
    %cst_48 = arith.constant 5.000000e-01 : f32
    %86 = vector.broadcast %cst_48 : f32 to vector<8x256xf32>
    %87 = arith.mulf %86, %85 : vector<8x256xf32>
    %cst_49 = arith.constant 0.707106769 : f32
    %88 = vector.broadcast %cst_49 : f32 to vector<8x256xf32>
    %89 = arith.mulf %85, %88 : vector<8x256xf32>
    %90 = math.erf %89 : vector<8x256xf32>
    %cst_50 = arith.constant 1.000000e+00 : f32
    %91 = vector.broadcast %cst_50 : f32 to vector<8x256xf32>
    %92 = arith.addf %91, %90 : vector<8x256xf32>
    %93 = arith.mulf %87, %92 : vector<8x256xf32>
    %c0_51 = arith.constant 0 : index
    %c0_52 = arith.constant 0 : index
    %94 = vector.load %arg17[%c0_51, %c0_52] : memref<256x128xf32, #tpu.memory_space<vmem>>, vector<256x128xf32>
    %cst_53 = arith.constant dense<0.000000e+00> : vector<8x128xf32>
    %95 = tpu.matmul %93, %94, %cst_53 {dimension_numbers = #tpu.dot_dimension_numbers<[1], [0], [0], [1], [0, 0, 1, 1], [], []>} : vector<8x256xf32>, vector<256x128xf32>, vector<8x128xf32> -> vector<8x128xf32>
    %c0_54 = arith.constant 0 : index
    %c0_55 = arith.constant 0 : index
    %96 = vector.load %arg18[%c0_54, %c0_55] : memref<1x128xf32, #tpu.memory_space<vmem>>, vector<1x128xf32>
    %97 = vector.broadcast %96 : vector<1x128xf32> to vector<8x128xf32>
    %98 = arith.addf %95, %97 : vector<8x128xf32>
    %99 = arith.addf %66, %98 : vector<8x128xf32>
    %100 = vector.shape_cast %99 : vector<8x128xf32> to vector<1x8x128xf32>
    %c0_56 = arith.constant 0 : index
    %c0_57 = arith.constant 0 : index
    %c0_58 = arith.constant 0 : index
    %101 = vector.load %arg19[%c0_56, %c0_57, %c0_58] : memref<1x8x128xf32, #tpu.memory_space<vmem>>, vector<1x8x128xf32>
    tpu.vector_store %arg19[%c0_56, %c0_57, %c0_58], %100 {strides = array<i32>} : memref<1x8x128xf32, #tpu.memory_space<vmem>>, vector<1x8x128xf32>,
    return
  }
  func.func @transform_0(%arg0: i32) -> (i32, i32, i32) {
    %c0_i32 = arith.constant 0 : i32
    %c0_i32_0 = arith.constant 0 : i32
    %c0_i32_1 = arith.constant 0 : i32
    return %arg0, %c0_i32, %c0_i32_0 : i32, i32, i32
  }
  func.func @transform_1(%arg0: i32) -> (i32, i32, i32) {
    %c0_i32 = arith.constant 0 : i32
    %c0_i32_0 = arith.constant 0 : i32
    %c0_i32_1 = arith.constant 0 : i32
    return %arg0, %c0_i32, %c0_i32_0 : i32, i32, i32
  }
  func.func @transform_2(%arg0: i32) -> (i32, i32) {
    %c0_i32 = arith.constant 0 : i32
    %c0_i32_0 = arith.constant 0 : i32
    %c0_i32_1 = arith.constant 0 : i32
    return %c0_i32, %c0_i32_0 : i32, i32
  }
  func.func @transform_3(%arg0: i32) -> (i32, i32) {
    %c0_i32 = arith.constant 0 : i32
    %c0_i32_0 = arith.constant 0 : i32
    %c0_i32_1 = arith.constant 0 : i32
    return %c0_i32, %c0_i32_0 : i32, i32
  }
  func.func @transform_4(%arg0: i32) -> (i32, i32) {
    %c0_i32 = arith.constant 0 : i32
    %c0_i32_0 = arith.constant 0 : i32
    %c0_i32_1 = arith.constant 0 : i32
    return %c0_i32, %c0_i32_0 : i32, i32
  }
  func.func @transform_5(%arg0: i32) -> (i32, i32) {
    %c0_i32 = arith.constant 0 : i32
    %c0_i32_0 = arith.constant 0 : i32
    %c0_i32_1 = arith.constant 0 : i32
    return %c0_i32, %c0_i32_0 : i32, i32
  }
  func.func @transform_6(%arg0: i32) -> (i32, i32) {
    %c0_i32 = arith.constant 0 : i32
    %c0_i32_0 = arith.constant 0 : i32
    %c0_i32_1 = arith.constant 0 : i32
    return %c0_i32, %c0_i32_0 : i32, i32
  }
  func.func @transform_7(%arg0: i32) -> (i32, i32) {
    %c0_i32 = arith.constant 0 : i32
    %c0_i32_0 = arith.constant 0 : i32
    %c0_i32_1 = arith.constant 0 : i32
    return %c0_i32, %c0_i32_0 : i32, i32
  }
  func.func @transform_8(%arg0: i32) -> (i32, i32) {
    %c0_i32 = arith.constant 0 : i32
    %c0_i32_0 = arith.constant 0 : i32
    %c0_i32_1 = arith.constant 0 : i32
    return %c0_i32, %c0_i32_0 : i32, i32
  }
  func.func @transform_9(%arg0: i32) -> (i32, i32) {
    %c0_i32 = arith.constant 0 : i32
    %c0_i32_0 = arith.constant 0 : i32
    %c0_i32_1 = arith.constant 0 : i32
    return %c0_i32, %c0_i32_0 : i32, i32
  }
  func.func @transform_10(%arg0: i32) -> (i32, i32) {
    %c0_i32 = arith.constant 0 : i32
    %c0_i32_0 = arith.constant 0 : i32
    %c0_i32_1 = arith.constant 0 : i32
    return %c0_i32, %c0_i32_0 : i32, i32
  }
  func.func @transform_11(%arg0: i32) -> (i32, i32) {
    %c0_i32 = arith.constant 0 : i32
    %c0_i32_0 = arith.constant 0 : i32
    %c0_i32_1 = arith.constant 0 : i32
    return %c0_i32, %c0_i32_0 : i32, i32
  }
  func.func @transform_12(%arg0: i32) -> (i32, i32) {
    %c0_i32 = arith.constant 0 : i32
    %c0_i32_0 = arith.constant 0 : i32
    %c0_i32_1 = arith.constant 0 : i32
    return %c0_i32, %c0_i32_0 : i32, i32
  }
  func.func @transform_13(%arg0: i32) -> (i32, i32) {
    %c0_i32 = arith.constant 0 : i32
    %c0_i32_0 = arith.constant 0 : i32
    %c0_i32_1 = arith.constant 0 : i32
    return %c0_i32, %c0_i32_0 : i32, i32
  }
  func.func @transform_14(%arg0: i32) -> (i32, i32) {
    %c0_i32 = arith.constant 0 : i32
    %c0_i32_0 = arith.constant 0 : i32
    %c0_i32_1 = arith.constant 0 : i32
    return %c0_i32, %c0_i32_0 : i32, i32
  }
  func.func @transform_15(%arg0: i32) -> (i32, i32) {
    %c0_i32 = arith.constant 0 : i32
    %c0_i32_0 = arith.constant 0 : i32
    %c0_i32_1 = arith.constant 0 : i32
    return %c0_i32, %c0_i32_0 : i32, i32
  }
  func.func @transform_16(%arg0: i32) -> (i32, i32) {
    %c0_i32 = arith.constant 0 : i32
    %c0_i32_0 = arith.constant 0 : i32
    %c0_i32_1 = arith.constant 0 : i32
    return %c0_i32, %c0_i32_0 : i32, i32
  }
  func.func @transform_17(%arg0: i32) -> (i32, i32) {
    %c0_i32 = arith.constant 0 : i32
    %c0_i32_0 = arith.constant 0 : i32
    %c0_i32_1 = arith.constant 0 : i32
    return %c0_i32, %c0_i32_0 : i32, i32
  }
  func.func @transform_18(%arg0: i32) -> (i32, i32, i32) {
    %c0_i32 = arith.constant 0 : i32
    %c0_i32_0 = arith.constant 0 : i32
    %c0_i32_1 = arith.constant 0 : i32
    return %arg0, %c0_i32, %c0_i32_0 : i32, i32, i32
  }
}

</mosaic_0001>

<llo_original>
// kernel: tpu_custom_call.1
$region0: #{tpu_custom_call.1}
  #allocation0 [shape = 'u32[]', space=smem, size = 0x4, offset = 0x4, fixed_abs, tag = 'smem constant byte address 0x4 - core index']
  #allocation1 [shape = 'u32[144,128]{1,0:T(1,128)}', space=vmem, size = 0x12000, scoped, tag = 'internal scratch']
  %s0 = inlined_call_operand.hbm [shape: f32[1,8,128], index: 0, kind: input, shape index: {}]
  %s1 = inlined_call_operand.hbm [shape: f32[1,4,128], index: 1, kind: input, shape index: {}]
  %s2 = inlined_call_operand.hbm [shape: f32[128,128], index: 2, kind: input, shape index: {}]
  %s3 = inlined_call_operand.hbm [shape: f32[128,128], index: 3, kind: input, shape index: {}]
  %s4 = inlined_call_operand.vmem [shape: f32[1,128], index: 4, kind: input, shape index: {}]
  %s5 = inlined_call_operand.vmem [shape: f32[1,128], index: 5, kind: input, shape index: {}]
  %s6 = inlined_call_operand.hbm [shape: f32[128,128], index: 6, kind: input, shape index: {}]
  %s7 = inlined_call_operand.vmem [shape: f32[1,128], index: 7, kind: input, shape index: {}]
  %s8 = inlined_call_operand.hbm [shape: f32[128,256], index: 8, kind: input, shape index: {}]
  %s9 = inlined_call_operand.vmem [shape: f32[1,256], index: 9, kind: input, shape index: {}]
  %s10 = inlined_call_operand.hbm [shape: f32[128,128], index: 10, kind: input, shape index: {}]
  %s11 = inlined_call_operand.vmem [shape: f32[1,128], index: 11, kind: input, shape index: {}]
  %s12 = inlined_call_operand.vmem [shape: f32[1,128], index: 12, kind: input, shape index: {}]
  %s13 = inlined_call_operand.vmem [shape: f32[1,128], index: 13, kind: input, shape index: {}]
  %s14 = inlined_call_operand.hbm [shape: f32[128,256], index: 14, kind: input, shape index: {}]
  %s15 = inlined_call_operand.vmem [shape: f32[1,256], index: 15, kind: input, shape index: {}]
  %s16 = inlined_call_operand.hbm [shape: f32[256,128], index: 16, kind: input, shape index: {}]
  %s17 = inlined_call_operand.vmem [shape: f32[1,128], index: 17, kind: input, shape index: {}]
  %s18 = inlined_call_operand.hbm [shape: f32[1,8,128], index: 18, kind: output, shape index: {}]
  %s19 = sld [smem:[#allocation0]]
  $region118: #{tpu_custom_call.1} parent=0
    _
  %s21 = ssub.s32 1, %s19
  %s22 = scalar_select 0, %s21, %s19
  $region1: #{tpu_custom_call.1} parent=0
    #allocation2 [shape = 'u8[4096]{0}', space=vmem, size = 0x1000, scoped, tag = 'input window, operand 0, single buffered']
    #allocation3 [shape = 's32[1]{0}', space=sflag, size = 0x4, scoped, tag = 'scoped memory for tpu_custom_call.1']
    #allocation4 [shape = 's32[1]{0}', space=sflag, size = 0x4, scoped, tag = 'scoped memory for tpu_custom_call.1']
    #allocation5 [shape = 'u8[2048]{0}', space=vmem, size = 0x800, scoped, tag = 'input window, operand 1, single buffered']
    #allocation6 [shape = 's32[1]{0}', space=sflag, size = 0x4, scoped, tag = 'scoped memory for tpu_custom_call.1']
    #allocation7 [shape = 'u8[65536]{0}', space=vmem, size = 0x10000, scoped, tag = 'input window, operand 2, single buffered']
    #allocation8 [shape = 'u8[65536]{0}', space=vmem, size = 0x10000, scoped, tag = 'input window, operand 3, single buffered']
    #allocation9 [shape = 's32[1]{0}', space=sflag, size = 0x4, scoped, tag = 'scoped memory for tpu_custom_call.1']
    #allocation10 [shape = 'u8[65536]{0}', space=vmem, size = 0x10000, scoped, tag = 'input window, operand 6, single buffered']
    #allocation11 [shape = 'u8[131072]{0}', space=vmem, size = 0x20000, scoped, tag = 'input window, operand 8, single buffered']
    #allocation12 [shape = 's32[1]{0}', space=sflag, size = 0x4, scoped, tag = 'scoped memory for tpu_custom_call.1']
    #allocation13 [shape = 'u8[65536]{0}', space=vmem, size = 0x10000, scoped, tag = 'input window, operand 10, single buffered']
    #allocation14 [shape = 'u8[131072]{0}', space=vmem, size = 0x20000, scoped, tag = 'input window, operand 14, single buffered']
    #allocation15 [shape = 's32[1]{0}', space=sflag, size = 0x4, scoped, tag = 'scoped memory for tpu_custom_call.1']
    #allocation16 [shape = 'u8[131072]{0}', space=vmem, size = 0x20000, scoped, tag = 'input window, operand 16, single buffered']
    #allocation17 [shape = 'u8[4096]{0}', space=vmem, size = 0x1000, scoped, tag = 'output window, operand 0, single buffered']
    %23 = vsyncpa [#allocation3], 0
    %24 = vsyncpa [#allocation6], 0
    %25 = vsyncpa [#allocation9], 0
    %26 = vsyncpa [#allocation12], 0
    %27 = vsyncpa [#allocation15], 0
    %28 = vsyncpa [#allocation4], 0
    // Predicated region
    $region2: #{tpu_custom_call.1} parent=1 // pred_check
      _
    $region3: #{tpu_custom_call.1} parent=1 // pred_check_branch
      %30 = sbr.rel (0) target = $region5
    $region4: #{tpu_custom_call.1} parent=1 // pred_region
      %s32 = ssub.s32 128, 128
      %33 = vsyncadd [#allocation3], %s32
      %s35 = sshll.u32 [#allocation2], 4
      %s36 = int_to_ptr.vmem [resolvable:$true] %s35
      %38 = dma.hbm_to_vmem [thread:$0]  %s0, 128, %s36, [#allocation3]
    $region5: #{tpu_custom_call.1} parent=1 // pred_fallthru
      _
    // Predicated region
    $region6: #{tpu_custom_call.1} parent=1 // pred_check
      _
    $region7: #{tpu_custom_call.1} parent=1 // pred_check_branch
      %40 = sbr.rel (0) target = $region9
    $region8: #{tpu_custom_call.1} parent=1 // pred_region
      %s42 = ssub.s32 64, 64
      %43 = vsyncadd [#allocation6], %s42
      %s45 = sshll.u32 [#allocation5], 4
      %s46 = int_to_ptr.vmem [resolvable:$true] %s45
      %48 = dma.hbm_to_vmem [thread:$0]  %s1, 64, %s46, [#allocation6]
    $region9: #{tpu_custom_call.1} parent=1 // pred_fallthru
      _
    // Predicated region
    $region10: #{tpu_custom_call.1} parent=1 // pred_check
      _
    $region11: #{tpu_custom_call.1} parent=1 // pred_check_branch
      %50 = sbr.rel (0) target = $region13
    $region12: #{tpu_custom_call.1} parent=1 // pred_region
      %s52 = ssub.s32 2048, 2048
      %53 = vsyncadd [#allocation6], %s52
      %s54 = sshll.u32 [#allocation7], 4
      %s55 = int_to_ptr.vmem [resolvable:$true] %s54
      %60 = dma.hbm_to_vmem [thread:$0]  %s2, 2048, %s55, [#allocation6], 128, 128, 8
    $region13: #{tpu_custom_call.1} parent=1 // pred_fallthru
      _
    // Predicated region
    $region14: #{tpu_custom_call.1} parent=1 // pred_check
      _
    $region15: #{tpu_custom_call.1} parent=1 // pred_check_branch
      %62 = sbr.rel (0) target = $region17
    $region16: #{tpu_custom_call.1} parent=1 // pred_region
      %s64 = ssub.s32 2048, 2048
      %65 = vsyncadd [#allocation9], %s64
      %s66 = sshll.u32 [#allocation8], 4
      %s67 = int_to_ptr.vmem [resolvable:$true] %s66
      %72 = dma.hbm_to_vmem [thread:$0]  %s3, 2048, %s67, [#allocation9], 128, 128, 8
    $region17: #{tpu_custom_call.1} parent=1 // pred_fallthru
      _
    // Predicated region
    $region18: #{tpu_custom_call.1} parent=1 // pred_check
      _
    $region19: #{tpu_custom_call.1} parent=1 // pred_check_branch
      %74 = sbr.rel (0) target = $region21
    $region20: #{tpu_custom_call.1} parent=1 // pred_region
      _
    $region21: #{tpu_custom_call.1} parent=1 // pred_fallthru
      _
    // Predicated region
    $region22: #{tpu_custom_call.1} parent=1 // pred_check
      _
    $region23: #{tpu_custom_call.1} parent=1 // pred_check_branch
      %76 = sbr.rel (0) target = $region25
    $region24: #{tpu_custom_call.1} parent=1 // pred_region
      _
    $region25: #{tpu_custom_call.1} parent=1 // pred_fallthru
      _
    // Predicated region
    $region26: #{tpu_custom_call.1} parent=1 // pred_check
      _
    $region27: #{tpu_custom_call.1} parent=1 // pred_check_branch
      %78 = sbr.rel (0) target = $region29
    $region28: #{tpu_custom_call.1} parent=1 // pred_region
      %s80 = ssub.s32 2048, 2048
      %81 = vsyncadd [#allocation9], %s80
      %s82 = sshll.u32 [#allocation10], 4
      %s83 = int_to_ptr.vmem [resolvable:$true] %s82
      %88 = dma.hbm_to_vmem [thread:$0]  %s6, 2048, %s83, [#allocation9], 128, 128, 8
    $region29: #{tpu_custom_call.1} parent=1 // pred_fallthru
      _
    // Predicated region
    $region30: #{tpu_custom_call.1} parent=1 // pred_check
      _
    $region31: #{tpu_custom_call.1} parent=1 // pred_check_branch
      %90 = sbr.rel (0) target = $region33
    $region32: #{tpu_custom_call.1} parent=1 // pred_region
      _
    $region33: #{tpu_custom_call.1} parent=1 // pred_fallthru
      _
    // Predicated region
    $region34: #{tpu_custom_call.1} parent=1 // pred_check
      _
    $region35: #{tpu_custom_call.1} parent=1 // pred_check_branch
      %92 = sbr.rel (0) target = $region37
    $region36: #{tpu_custom_call.1} parent=1 // pred_region
      %s94 = ssub.s32 4096, 4096
      %95 = vsyncadd [#allocation12], %s94
      %s96 = sshll.u32 [#allocation11], 4
      %s97 = int_to_ptr.vmem [resolvable:$true] %s96
      %102 = dma.hbm_to_vmem [thread:$0]  %s8, 4096, %s97, [#allocation12], 256, 256, 16
    $region37: #{tpu_custom_call.1} parent=1 // pred_fallthru
      _
    // Predicated region
    $region38: #{tpu_custom_call.1} parent=1 // pred_check
      _
    $region39: #{tpu_custom_call.1} parent=1 // pred_check_branch
      %104 = sbr.rel (0) target = $region41
    $region40: #{tpu_custom_call.1} parent=1 // pred_region
      _
    $region41: #{tpu_custom_call.1} parent=1 // pred_fallthru
      _
    // Predicated region
    $region42: #{tpu_custom_call.1} parent=1 // pred_check
      _
    $region43: #{tpu_custom_call.1} parent=1 // pred_check_branch
      %106 = sbr.rel (0) target = $region45
    $region44: #{tpu_custom_call.1} parent=1 // pred_region
      %s108 = ssub.s32 2048, 2048
      %109 = vsyncadd [#allocation12], %s108
      %s110 = sshll.u32 [#allocation13], 4
      %s111 = int_to_ptr.vmem [resolvable:$true] %s110
      %116 = dma.hbm_to_vmem [thread:$0]  %s10, 2048, %s111, [#allocation12], 128, 128, 8
    $region45: #{tpu_custom_call.1} parent=1 // pred_fallthru
      _
    // Predicated region
    $region46: #{tpu_custom_call.1} parent=1 // pred_check
      _
    $region47: #{tpu_custom_call.1} parent=1 // pred_check_branch
      %118 = sbr.rel (0) target = $region49
    $region48: #{tpu_custom_call.1} parent=1 // pred_region
      _
    $region49: #{tpu_custom_call.1} parent=1 // pred_fallthru
      _
    // Predicated region
    $region50: #{tpu_custom_call.1} parent=1 // pred_check
      _
    $region51: #{tpu_custom_call.1} parent=1 // pred_check_branch
      %120 = sbr.rel (0) target = $region53
    $region52: #{tpu_custom_call.1} parent=1 // pred_region
      _
    $region53: #{tpu_custom_call.1} parent=1 // pred_fallthru
      _
    // Predicated region
    $region54: #{tpu_custom_call.1} parent=1 // pred_check
      _
    $region55: #{tpu_custom_call.1} parent=1 // pred_check_branch
      %122 = sbr.rel (0) target = $region57
    $region56: #{tpu_custom_call.1} parent=1 // pred_region
      _
    $region57: #{tpu_custom_call.1} parent=1 // pred_fallthru
      _
    // Predicated region
    $region58: #{tpu_custom_call.1} parent=1 // pred_check
      _
    $region59: #{tpu_custom_call.1} parent=1 // pred_check_branch
      %124 = sbr.rel (0) target = $region61
    $region60: #{tpu_custom_call.1} parent=1 // pred_region
      %s126 = ssub.s32 4096, 4096
      %127 = vsyncadd [#allocation15], %s126
      %s128 = sshll.u32 [#allocation14], 4
      %s129 = int_to_ptr.vmem [resolvable:$true] %s128
      %134 = dma.hbm_to_vmem [thread:$0]  %s14, 4096, %s129, [#allocation15], 256, 256, 16
    $region61: #{tpu_custom_call.1} parent=1 // pred_fallthru
      _
    // Predicated region
    $region62: #{tpu_custom_call.1} parent=1 // pred_check
      _
    $region63: #{tpu_custom_call.1} parent=1 // pred_check_branch
      %136 = sbr.rel (0) target = $region65
    $region64: #{tpu_custom_call.1} parent=1 // pred_region
      _
    $region65: #{tpu_custom_call.1} parent=1 // pred_fallthru
      _
    // Predicated region
    $region66: #{tpu_custom_call.1} parent=1 // pred_check
      _
    $region67: #{tpu_custom_call.1} parent=1 // pred_check_branch
      %138 = sbr.rel (0) target = $region69
    $region68: #{tpu_custom_call.1} parent=1 // pred_region
      %s140 = ssub.s32 4096, 4096
      %141 = vsyncadd [#allocation15], %s140
      %s142 = sshll.u32 [#allocation16], 4
      %s143 = int_to_ptr.vmem [resolvable:$true] %s142
      %148 = dma.hbm_to_vmem [thread:$0]  %s16, 4096, %s143, [#allocation15], 128, 128, 8
    $region69: #{tpu_custom_call.1} parent=1 // pred_fallthru
      _
    // Predicated region
    $region70: #{tpu_custom_call.1} parent=1 // pred_check
      _
    $region71: #{tpu_custom_call.1} parent=1 // pred_check_branch
      %150 = sbr.rel (0) target = $region73
    $region72: #{tpu_custom_call.1} parent=1 // pred_region
      _
    $region73: #{tpu_custom_call.1} parent=1 // pred_fallthru
      _
    // Predicated region
    $region74: #{tpu_custom_call.1} parent=1 // pred_check
      _
    $region75: #{tpu_custom_call.1} parent=1 // pred_check_branch
      %152 = sbr.rel (0) target = $region77
    $region76: #{tpu_custom_call.1} parent=1 // pred_region
      %153 = dma.done [#allocation3], 128
    $region77: #{tpu_custom_call.1} parent=1 // pred_fallthru
      _
    // Predicated region
    $region78: #{tpu_custom_call.1} parent=1 // pred_check
      _
    $region79: #{tpu_custom_call.1} parent=1 // pred_check_branch
      %155 = sbr.rel (0) target = $region81
    $region80: #{tpu_custom_call.1} parent=1 // pred_region
      %156 = dma.done [#allocation6], 64
    $region81: #{tpu_custom_call.1} parent=1 // pred_fallthru
      _
    // Predicated region
    $region82: #{tpu_custom_call.1} parent=1 // pred_check
      _
    $region83: #{tpu_custom_call.1} parent=1 // pred_check_branch
      %158 = sbr.rel (0) target = $region85
    $region84: #{tpu_custom_call.1} parent=1 // pred_region
      %159 = dma.done [#allocation6], 2048
    $region85: #{tpu_custom_call.1} parent=1 // pred_fallthru
      _
    // Predicated region
    $region86: #{tpu_custom_call.1} parent=1 // pred_check
      _
    $region87: #{tpu_custom_call.1} parent=1 // pred_check_branch
      %161 = sbr.rel (0) target = $region89
    $region88: #{tpu_custom_call.1} parent=1 // pred_region
      %162 = dma.done [#allocation9], 2048
    $region89: #{tpu_custom_call.1} parent=1 // pred_fallthru
      _
    // Predicated region
    $region90: #{tpu_custom_call.1} parent=1 // pred_check
      _
    $region91: #{tpu_custom_call.1} parent=1 // pred_check_branch
      %164 = sbr.rel (0) target = $region93
    $region92: #{tpu_custom_call.1} parent=1 // pred_region
      %165 = dma.done [#allocation9], 2048
    $region93: #{tpu_custom_call.1} parent=1 // pred_fallthru
      _
    // Predicated region
    $region94: #{tpu_custom_call.1} parent=1 // pred_check
      _
    $region95: #{tpu_custom_call.1} parent=1 // pred_check_branch
      %167 = sbr.rel (0) target = $region97
    $region96: #{tpu_custom_call.1} parent=1 // pred_region
      %168 = dma.done [#allocation12], 4096
    $region97: #{tpu_custom_call.1} parent=1 // pred_fallthru
      _
    // Predicated region
    $region98: #{tpu_custom_call.1} parent=1 // pred_check
      _
    $region99: #{tpu_custom_call.1} parent=1 // pred_check_branch
      %170 = sbr.rel (0) target = $region101
    $region100: #{tpu_custom_call.1} parent=1 // pred_region
      %171 = dma.done [#allocation12], 2048
    $region101: #{tpu_custom_call.1} parent=1 // pred_fallthru
      _
    // Predicated region
    $region102: #{tpu_custom_call.1} parent=1 // pred_check
      _
    $region103: #{tpu_custom_call.1} parent=1 // pred_check_branch
      %173 = sbr.rel (0) target = $region105
    $region104: #{tpu_custom_call.1} parent=1 // pred_region
      %174 = dma.done [#allocation15], 4096
    $region105: #{tpu_custom_call.1} parent=1 // pred_fallthru
      _
    // Predicated region
    $region106: #{tpu_custom_call.1} parent=1 // pred_check
      _
    $region107: #{tpu_custom_call.1} parent=1 // pred_check_branch
      %176 = sbr.rel (0) target = $region109
    $region108: #{tpu_custom_call.1} parent=1 // pred_region
      %177 = dma.done [#allocation15], 4096
    $region109: #{tpu_custom_call.1} parent=1 // pred_fallthru
      _
    %v178 = vld [vmem:[#allocation2] sm:$0xff]
    %v179 = vld [vmem:[#allocation5] sm:$0xf]
    %v180 = vld [vmem:[#allocation7] sm:$0xff]
    %v181 = vld [vmem:[#allocation7 + $0x8] sm:$0xff]
    %v182 = vld [vmem:[#allocation7 + $0x10] sm:$0xff]
    %v183 = vld [vmem:[#allocation7 + $0x18] sm:$0xff]
    %v184 = vld [vmem:[#allocation7 + $0x20] sm:$0xff]
    %v185 = vld [vmem:[#allocation7 + $0x28] sm:$0xff]
    %v186 = vld [vmem:[#allocation7 + $0x30] sm:$0xff]
    %v187 = vld [vmem:[#allocation7 + $0x38] sm:$0xff]
    %v188 = vld [vmem:[#allocation7 + $0x40] sm:$0xff]
    %v189 = vld [vmem:[#allocation7 + $0x48] sm:$0xff]
    %v190 = vld [vmem:[#allocation7 + $0x50] sm:$0xff]
    %v191 = vld [vmem:[#allocation7 + $0x58] sm:$0xff]
    %v192 = vld [vmem:[#allocation7 + $0x60] sm:$0xff]
    %v193 = vld [vmem:[#allocation7 + $0x68] sm:$0xff]
    %v194 = vld [vmem:[#allocation7 + $0x70] sm:$0xff]
    %v195 = vld [vmem:[#allocation7 + $0x78] sm:$0xff]
    %v196 = vld [vmem:[#allocation8] sm:$0xff]
    %v197 = vld [vmem:[#allocation8 + $0x8] sm:$0xff]
    %v198 = vld [vmem:[#allocation8 + $0x10] sm:$0xff]
    %v199 = vld [vmem:[#allocation8 + $0x18] sm:$0xff]
    %v200 = vld [vmem:[#allocation8 + $0x20] sm:$0xff]
    %v201 = vld [vmem:[#allocation8 + $0x28] sm:$0xff]
    %v202 = vld [vmem:[#allocation8 + $0x30] sm:$0xff]
    %v203 = vld [vmem:[#allocation8 + $0x38] sm:$0xff]
    %v204 = vld [vmem:[#allocation8 + $0x40] sm:$0xff]
    %v205 = vld [vmem:[#allocation8 + $0x48] sm:$0xff]
    %v206 = vld [vmem:[#allocation8 + $0x50] sm:$0xff]
    %v207 = vld [vmem:[#allocation8 + $0x58] sm:$0xff]
    %v208 = vld [vmem:[#allocation8 + $0x60] sm:$0xff]
    %v209 = vld [vmem:[#allocation8 + $0x68] sm:$0xff]
    %v210 = vld [vmem:[#allocation8 + $0x70] sm:$0xff]
    %v211 = vld [vmem:[#allocation8 + $0x78] sm:$0xff]
    %v212 = vld [vmem:[%s4] sm:$0x1]
    %v213 = vld [vmem:[%s5] sm:$0x1]
    %214 = vmatprep.subr.mxu0 0.0
    %215 = vmatpush1.msra.mxu0 %v180
    %216 = vmatprep.subr.mxu0 0.0
    %217 = vmatpush1.msra.mxu0 %v181
    %218 = vmatprep.subr.mxu0 0.0
    %219 = vmatpush1.msra.mxu0 %v182
    %220 = vmatprep.subr.mxu0 0.0
    %221 = vmatpush1.msra.mxu0 %v183
    %222 = vmatprep.subr.mxu0 0.0
    %223 = vmatpush1.msra.mxu0 %v184
    %224 = vmatprep.subr.mxu0 0.0
    %225 = vmatpush1.msra.mxu0 %v185
    %226 = vmatprep.subr.mxu0 0.0
    %227 = vmatpush1.msra.mxu0 %v186
    %228 = vmatprep.subr.mxu0 0.0
    %229 = vmatpush1.msra.mxu0 %v187
    %230 = vmatprep.subr.mxu0 0.0
    %231 = vmatpush1.msra.mxu0 %v188
    %232 = vmatprep.subr.mxu0 0.0
    %233 = vmatpush1.msra.mxu0 %v189
    %234 = vmatprep.subr.mxu0 0.0
    %235 = vmatpush1.msra.mxu0 %v190
    %236 = vmatprep.subr.mxu0 0.0
    %237 = vmatpush1.msra.mxu0 %v191
    %238 = vmatprep.subr.mxu0 0.0
    %239 = vmatpush1.msra.mxu0 %v192
    %240 = vmatprep.subr.mxu0 0.0
    %241 = vmatpush1.msra.mxu0 %v193
    %242 = vmatprep.subr.mxu0 0.0
    %243 = vmatpush1.msra.mxu0 %v194
    %244 = vmatprep.subr.mxu0 0.0
    %245 = vmatpush1.msra.mxu0 %v195
    %246 = vmatprep.subr.mxu0 0.0
    %247 = vmatpush1.msra.mxu0 0.0
    %248 = vmatprep.subr.mxu0 0.0
    %249 = vmatpush1.msra.mxu0 0.0
    %250 = vmatprep.subr.mxu0 0.0
    %251 = vmatpush1.msra.mxu0 0.0
    %252 = vmatprep.subr.mxu0 0.0
    %253 = vmatpush1.msra.mxu0 0.0
    %254 = vmatprep.subr.mxu0 0.0
    %255 = vmatpush1.msra.mxu0 0.0
    %256 = vmatprep.subr.mxu0 0.0
    %257 = vmatpush1.msra.mxu0 0.0
    %258 = vmatprep.subr.mxu0 0.0
    %259 = vmatpush1.msra.mxu0 0.0
    %260 = vmatprep.subr.mxu0 0.0
    %261 = vmatpush1.msra.mxu0 0.0
    %262 = vmatprep.subr.mxu0 0.0
    %263 = vmatpush1.msra.mxu0 0.0
    %264 = vmatprep.subr.mxu0 0.0
    %265 = vmatpush1.msra.mxu0 0.0
    %266 = vmatprep.subr.mxu0 0.0
    %267 = vmatpush1.msra.mxu0 0.0
    %268 = vmatprep.subr.mxu0 0.0
    %269 = vmatpush1.msra.mxu0 0.0
    %270 = vmatprep.subr.mxu0 0.0
    %271 = vmatpush1.msra.mxu0 0.0
    %272 = vmatprep.subr.mxu0 0.0
    %273 = vmatpush1.msra.mxu0 0.0
    %274 = vmatprep.subr.mxu0 0.0
    %275 = vmatpush1.msra.mxu0 0.0
    %276 = vmatprep.subr.mxu0 0.0
    %277 = vmatpush1.msra.mxu0 0.0
    %278 = vmatprep.mubr.f32.mxu0 0.0
    %279 = vmatmul.mubr.f32.gmra.mrb[0].mxu0 %v178
    %v280 = vpop.f32.mrb[0].mxu0
    %v281 = vadd.f32 0.0, %v280
    %v282 = vpop.f32.mrb[0].mxu0
    %283 = vdwg.mxu0
    %v284 = vsub.f32 %v178, %v281
    %v285 = vmul.f32 %v284, %v284
    %286 = vmatprep.subr.mxu0 0.0
    %287 = vmatpush1.msra.mxu0 %v180
    %288 = vmatprep.subr.mxu0 0.0
    %289 = vmatpush1.msra.mxu0 %v181
    %290 = vmatprep.subr.mxu0 0.0
    %291 = vmatpush1.msra.mxu0 %v182
    %292 = vmatprep.subr.mxu0 0.0
    %293 = vmatpush1.msra.mxu0 %v183
    %294 = vmatprep.subr.mxu0 0.0
    %295 = vmatpush1.msra.mxu0 %v184
    %296 = vmatprep.subr.mxu0 0.0
    %297 = vmatpush1.msra.mxu0 %v185
    %298 = vmatprep.subr.mxu0 0.0
    %299 = vmatpush1.msra.mxu0 %v186
    %300 = vmatprep.subr.mxu0 0.0
    %301 = vmatpush1.msra.mxu0 %v187
    %302 = vmatprep.subr.mxu0 0.0
    %303 = vmatpush1.msra.mxu0 %v188
    %304 = vmatprep.subr.mxu0 0.0
    %305 = vmatpush1.msra.mxu0 %v189
    %306 = vmatprep.subr.mxu0 0.0
    %307 = vmatpush1.msra.mxu0 %v190
    %308 = vmatprep.subr.mxu0 0.0
    %309 = vmatpush1.msra.mxu0 %v191
    %310 = vmatprep.subr.mxu0 0.0
    %311 = vmatpush1.msra.mxu0 %v192
    %312 = vmatprep.subr.mxu0 0.0
    %313 = vmatpush1.msra.mxu0 %v193
    %314 = vmatprep.subr.mxu0 0.0
    %315 = vmatpush1.msra.mxu0 %v194
    %316 = vmatprep.subr.mxu0 0.0
    %317 = vmatpush1.msra.mxu0 %v195
    %318 = vmatprep.subr.mxu0 0.0
    %319 = vmatpush1.msra.mxu0 0.0
    %320 = vmatprep.subr.mxu0 0.0
    %321 = vmatpush1.msra.mxu0 0.0
    %322 = vmatprep.subr.mxu0 0.0
    %323 = vmatpush1.msra.mxu0 0.0
    %324 = vmatprep.subr.mxu0 0.0
    %325 = vmatpush1.msra.mxu0 0.0
    %326 = vmatprep.subr.mxu0 0.0
    %327 = vmatpush1.msra.mxu0 0.0
    %328 = vmatprep.subr.mxu0 0.0
    %329 = vmatpush1.msra.mxu0 0.0
    %330 = vmatprep.subr.mxu0 0.0
    %331 = vmatpush1.msra.mxu0 0.0
    %332 = vmatprep.subr.mxu0 0.0
    %333 = vmatpush1.msra.mxu0 0.0
    %334 = vmatprep.subr.mxu0 0.0
    %335 = vmatpush1.msra.mxu0 0.0
    %336 = vmatprep.subr.mxu0 0.0
    %337 = vmatpush1.msra.mxu0 0.0
    %338 = vmatprep.subr.mxu0 0.0
    %339 = vmatpush1.msra.mxu0 0.0
    %340 = vmatprep.subr.mxu0 0.0
    %341 = vmatpush1.msra.mxu0 0.0
    %342 = vmatprep.subr.mxu0 0.0
    %343 = vmatpush1.msra.mxu0 0.0
    %344 = vmatprep.subr.mxu0 0.0
    %345 = vmatpush1.msra.mxu0 0.0
    %346 = vmatprep.subr.mxu0 0.0
    %347 = vmatpush1.msra.mxu0 0.0
    %348 = vmatprep.subr.mxu0 0.0
    %349 = vmatpush1.msra.mxu0 0.0
    %350 = vmatprep.mubr.f32.mxu0 0.0
    %351 = vmatmul.mubr.f32.gmra.mrb[0].mxu0 %v285
    %v352 = vpop.f32.mrb[0].mxu0
    %v353 = vadd.f32 1e-05, %v352
    %v354 = vpop.f32.mrb[0].mxu0
    %355 = vdwg.mxu0
    %v356 = vrsqrt.pop %v353
    %v357 = vmul.f32 %v284, %v356
    %v359 = vlaneseq
    %v360 = vshrl.u32 %v359, 7
    %v361 = vsub.s32 0, %v360
    %v362 = vrot.slane %v212, %v361
    %v364 = vmul.f32 %v357, %v362
    %v366 = vlaneseq
    %v367 = vshrl.u32 %v366, 7
    %v368 = vsub.s32 0, %v367
    %v369 = vrot.slane %v213, %v368
    %v371 = vadd.f32 %v364, %v369
    %v372 = vld [vmem:[#allocation10] sm:$0xff]
    %v373 = vld [vmem:[#allocation10 + $0x8] sm:$0xff]
    %v374 = vld [vmem:[#allocation10 + $0x10] sm:$0xff]
    %v375 = vld [vmem:[#allocation10 + $0x18] sm:$0xff]
    %v376 = vld [vmem:[#allocation10 + $0x20] sm:$0xff]
    %v377 = vld [vmem:[#allocation10 + $0x28] sm:$0xff]
    %v378 = vld [vmem:[#allocation10 + $0x30] sm:$0xff]
    %v379 = vld [vmem:[#allocation10 + $0x38] sm:$0xff]
    %v380 = vld [vmem:[#allocation10 + $0x40] sm:$0xff]
    %v381 = vld [vmem:[#allocation10 + $0x48] sm:$0xff]
    %v382 = vld [vmem:[#allocation10 + $0x50] sm:$0xff]
    %v383 = vld [vmem:[#allocation10 + $0x58] sm:$0xff]
    %v384 = vld [vmem:[#allocation10 + $0x60] sm:$0xff]
    %v385 = vld [vmem:[#allocation10 + $0x68] sm:$0xff]
    %v386 = vld [vmem:[#allocation10 + $0x70] sm:$0xff]
    %v387 = vld [vmem:[#allocation10 + $0x78] sm:$0xff]
    %v388 = vld [vmem:[%s7] sm:$0x1]
    %v390 = vlaneseq
    %v391 = vshrl.u32 %v390, 7
    %v392 = vsub.s32 0, %v391
    %v393 = vrot.slane %v388, %v392
    %395 = vmatprep.subr.mxu0 0.0
    %396 = vmatpush1.msra.mxu0 %v372
    %397 = vmatprep.subr.mxu0 0.0
    %398 = vmatpush1.msra.mxu0 %v373
    %399 = vmatprep.subr.mxu0 0.0
    %400 = vmatpush1.msra.mxu0 %v374
    %401 = vmatprep.subr.mxu0 0.0
    %402 = vmatpush1.msra.mxu0 %v375
    %403 = vmatprep.subr.mxu0 0.0
    %404 = vmatpush1.msra.mxu0 %v376
    %405 = vmatprep.subr.mxu0 0.0
    %406 = vmatpush1.msra.mxu0 %v377
    %407 = vmatprep.subr.mxu0 0.0
    %408 = vmatpush1.msra.mxu0 %v378
    %409 = vmatprep.subr.mxu0 0.0
    %410 = vmatpush1.msra.mxu0 %v379
    %411 = vmatprep.subr.mxu0 0.0
    %412 = vmatpush1.msra.mxu0 %v380
    %413 = vmatprep.subr.mxu0 0.0
    %414 = vmatpush1.msra.mxu0 %v381
    %415 = vmatprep.subr.mxu0 0.0
    %416 = vmatpush1.msra.mxu0 %v382
    %417 = vmatprep.subr.mxu0 0.0
    %418 = vmatpush1.msra.mxu0 %v383
    %419 = vmatprep.subr.mxu0 0.0
    %420 = vmatpush1.msra.mxu0 %v384
    %421 = vmatprep.subr.mxu0 0.0
    %422 = vmatpush1.msra.mxu0 %v385
    %423 = vmatprep.subr.mxu0 0.0
    %424 = vmatpush1.msra.mxu0 %v386
    %425 = vmatprep.subr.mxu0 0.0
    %426 = vmatpush1.msra.mxu0 %v387
    %427 = vmatprep.subr.mxu0 0.0
    %428 = vmatpush1.msra.mxu0 0.0
    %429 = vmatprep.subr.mxu0 0.0
    %430 = vmatpush1.msra.mxu0 0.0
    %431 = vmatprep.subr.mxu0 0.0
    %432 = vmatpush1.msra.mxu0 0.0
    %433 = vmatprep.subr.mxu0 0.0
    %434 = vmatpush1.msra.mxu0 0.0
    %435 = vmatprep.subr.mxu0 0.0
    %436 = vmatpush1.msra.mxu0 0.0
    %437 = vmatprep.subr.mxu0 0.0
    %438 = vmatpush1.msra.mxu0 0.0
    %439 = vmatprep.subr.mxu0 0.0
    %440 = vmatpush1.msra.mxu0 0.0
    %441 = vmatprep.subr.mxu0 0.0
    %442 = vmatpush1.msra.mxu0 0.0
    %443 = vmatprep.subr.mxu0 0.0
    %444 = vmatpush1.msra.mxu0 0.0
    %445 = vmatprep.subr.mxu0 0.0
    %446 = vmatpush1.msra.mxu0 0.0
    %447 = vmatprep.subr.mxu0 0.0
    %448 = vmatpush1.msra.mxu0 0.0
    %449 = vmatprep.subr.mxu0 0.0
    %450 = vmatpush1.msra.mxu0 0.0
    %451 = vmatprep.subr.mxu0 0.0
    %452 = vmatpush1.msra.mxu0 0.0
    %453 = vmatprep.subr.mxu0 0.0
    %454 = vmatpush1.msra.mxu0 0.0
    %455 = vmatprep.subr.mxu0 0.0
    %456 = vmatpush1.msra.mxu0 0.0
    %457 = vmatprep.subr.mxu0 0.0
    %458 = vmatpush1.msra.mxu0 0.0
    %459 = vmatprep.mubr.f32.mxu0 0.0
    %460 = vmatmul.mubr.f32.gmra.mrb[0].mxu0 %v371
    %v461 = vpop.f32.mrb[0].mxu0
    %v462 = vadd.f32 %v393, %v461
    %v463 = vpop.f32.mrb[0].mxu0
    %464 = vdwg.mxu0
    %v465 = vmul.f32 %v462, 0.35355338
    %v466 = vld [vmem:[#allocation11] sm:$0xff]
    %v467 = vld [vmem:[#allocation11 + $0x8] sm:$0xff]
    %v468 = vld [vmem:[#allocation11 + $0x10] sm:$0xff]
    %v469 = vld [vmem:[#allocation11 + $0x18] sm:$0xff]
    %v470 = vld [vmem:[#allocation11 + $0x20] sm:$0xff]
    %v471 = vld [vmem:[#allocation11 + $0x28] sm:$0xff]
    %v472 = vld [vmem:[#allocation11 + $0x30] sm:$0xff]
    %v473 = vld [vmem:[#allocation11 + $0x38] sm:$0xff]
    %v474 = vld [vmem:[#allocation11 + $0x40] sm:$0xff]
    %v475 = vld [vmem:[#allocation11 + $0x48] sm:$0xff]
    %v476 = vld [vmem:[#allocation11 + $0x50] sm:$0xff]
    %v477 = vld [vmem:[#allocation11 + $0x58] sm:$0xff]
    %v478 = vld [vmem:[#allocation11 + $0x60] sm:$0xff]
    %v479 = vld [vmem:[#allocation11 + $0x68] sm:$0xff]
    %v480 = vld [vmem:[#allocation11 + $0x70] sm:$0xff]
    %v481 = vld [vmem:[#allocation11 + $0x78] sm:$0xff]
    %v482 = vld [vmem:[#allocation11 + $0x80] sm:$0xff]
    %v483 = vld [vmem:[#allocation11 + $0x88] sm:$0xff]
    %v484 = vld [vmem:[#allocation11 + $0x90] sm:$0xff]
    %v485 = vld [vmem:[#allocation11 + $0x98] sm:$0xff]
    %v486 = vld [vmem:[#allocation11 + $0xa0] sm:$0xff]
    %v487 = vld [vmem:[#allocation11 + $0xa8] sm:$0xff]
    %v488 = vld [vmem:[#allocation11 + $0xb0] sm:$0xff]
    %v489 = vld [vmem:[#allocation11 + $0xb8] sm:$0xff]
    %v490 = vld [vmem:[#allocation11 + $0xc0] sm:$0xff]
    %v491 = vld [vmem:[#allocation11 + $0xc8] sm:$0xff]
    %v492 = vld [vmem:[#allocation11 + $0xd0] sm:$0xff]
    %v493 = vld [vmem:[#allocation11 + $0xd8] sm:$0xff]
    %v494 = vld [vmem:[#allocation11 + $0xe0] sm:$0xff]
    %v495 = vld [vmem:[#allocation11 + $0xe8] sm:$0xff]
    %v496 = vld [vmem:[#allocation11 + $0xf0] sm:$0xff]
    %v497 = vld [vmem:[#allocation11 + $0xf8] sm:$0xff]
    %v498 = vld [vmem:[%s9] sm:$0x3]
    %v500 = vlaneseq
    %v501 = vshrl.u32 %v500, 7
    %v502 = vsub.s32 0, %v501
    %v503 = vrot.slane %v498, %v502
    %v504 = vlaneseq
    %v505 = vshrl.u32 %v504, 7
    %v506 = vsub.s32 1, %v505
    %v507 = vrot.slane %v498, %v506
    %510 = vmatprep.subr.mxu0 %v467
    %511 = vmatpush1.msra.mxu0 %v466
    %512 = vmatprep.subr.mxu0 %v469
    %513 = vmatpush1.msra.mxu0 %v468
    %514 = vmatprep.subr.mxu0 %v471
    %515 = vmatpush1.msra.mxu0 %v470
    %516 = vmatprep.subr.mxu0 %v473
    %517 = vmatpush1.msra.mxu0 %v472
    %518 = vmatprep.subr.mxu0 %v475
    %519 = vmatpush1.msra.mxu0 %v474
    %520 = vmatprep.subr.mxu0 %v477
    %521 = vmatpush1.msra.mxu0 %v476
    %522 = vmatprep.subr.mxu0 %v479
    %523 = vmatpush1.msra.mxu0 %v478
    %524 = vmatprep.subr.mxu0 %v481
    %525 = vmatpush1.msra.mxu0 %v480
    %526 = vmatprep.subr.mxu0 %v483
    %527 = vmatpush1.msra.mxu0 %v482
    %528 = vmatprep.subr.mxu0 %v485
    %529 = vmatpush1.msra.mxu0 %v484
    %530 = vmatprep.subr.mxu0 %v487
    %531 = vmatpush1.msra.mxu0 %v486
    %532 = vmatprep.subr.mxu0 %v489
    %533 = vmatpush1.msra.mxu0 %v488
    %534 = vmatprep.subr.mxu0 %v491
    %535 = vmatpush1.msra.mxu0 %v490
    %536 = vmatprep.subr.mxu0 %v493
    %537 = vmatpush1.msra.mxu0 %v492
    %538 = vmatprep.subr.mxu0 %v495
    %539 = vmatpush1.msra.mxu0 %v494
    %540 = vmatprep.subr.mxu0 %v497
    %541 = vmatpush1.msra.mxu0 %v496
    %542 = vmatprep.subr.mxu0 0.0
    %543 = vmatpush1.msra.mxu0 0.0
    %544 = vmatprep.subr.mxu0 0.0
    %545 = vmatpush1.msra.mxu0 0.0
    %546 = vmatprep.subr.mxu0 0.0
    %547 = vmatpush1.msra.mxu0 0.0
    %548 = vmatprep.subr.mxu0 0.0
    %549 = vmatpush1.msra.mxu0 0.0
    %550 = vmatprep.subr.mxu0 0.0
    %551 = vmatpush1.msra.mxu0 0.0
    %552 = vmatprep.subr.mxu0 0.0
    %553 = vmatpush1.msra.mxu0 0.0
    %554 = vmatprep.subr.mxu0 0.0
    %555 = vmatpush1.msra.mxu0 0.0
    %556 = vmatprep.subr.mxu0 0.0
    %557 = vmatpush1.msra.mxu0 0.0
    %558 = vmatprep.subr.mxu0 0.0
    %559 = vmatpush1.msra.mxu0 0.0
    %560 = vmatprep.subr.mxu0 0.0
    %561 = vmatpush1.msra.mxu0 0.0
    %562 = vmatprep.subr.mxu0 0.0
    %563 = vmatpush1.msra.mxu0 0.0
    %564 = vmatprep.subr.mxu0 0.0
    %565 = vmatpush1.msra.mxu0 0.0
    %566 = vmatprep.subr.mxu0 0.0
    %567 = vmatpush1.msra.mxu0 0.0
    %568 = vmatprep.subr.mxu0 0.0
    %569 = vmatpush1.msra.mxu0 0.0
    %570 = vmatprep.subr.mxu0 0.0
    %571 = vmatpush1.msra.mxu0 0.0
    %572 = vmatprep.subr.mxu0 0.0
    %573 = vmatpush1.msra.mxu0 0.0
    %574 = vmatprep.mubr.f32.mxu0 0.0
    %575 = vmatmul.mubr.f32.gmra.mrb[0].mxu0 %v179
    %v576 = vpop.f32.mrb[0].mxu0
    %v577 = vadd.f32 %v503, %v576
    %v578 = vpop.f32.mrb[0].mxu0
    %v579 = vadd.f32 %v507, %v578
    %580 = vdwg.mxu0
    %v583 = vunpack.c.l.s4 1966171168
    %v584 = vunpack.c.0.s8 %v583
    %v585 = vlaneseq
    %v586 = vshrl.u32 %v585, 7
    %v587 = vsub.s32 %v584, %v586
    %v588 = vrot.slane %v577, %v587
    %v589 = vcombine.high %v588, %v588
    %v591 = vunpack.c.l.s4 1966171168
    %v592 = vunpack.c.0.s8 %v591
    %v593 = vlaneseq
    %v594 = vshrl.u32 %v593, 7
    %v595 = vsub.s32 %v592, %v594
    %v596 = vrot.slane %v588, %v595
    %v598 = vunpack.c.l.s4 1966171168
    %v599 = vunpack.c.0.s8 %v598
    %v600 = vlaneseq
    %v601 = vshrl.u32 %v600, 7
    %v602 = vsub.s32 %v599, %v601
    %v603 = vrot.slane %v589, %v602
    %v604 = vcombine.high %v596, %v596
    %v605 = vcombine.high %v603, %v603
    %v608 = vunpack.c.l.s4 1966171168
    %v609 = vunpack.c.0.s8 %v608
    %v610 = vlaneseq
    %v611 = vshrl.u32 %v610, 7
    %v612 = vsub.s32 %v609, %v611
    %v613 = vrot.slane %v579, %v612
    %v614 = vcombine.high %v613, %v613
    %v616 = vunpack.c.l.s4 1966171168
    %v617 = vunpack.c.0.s8 %v616
    %v618 = vlaneseq
    %v619 = vshrl.u32 %v618, 7
    %v620 = vsub.s32 %v617, %v619
    %v621 = vrot.slane %v613, %v620
    %v623 = vunpack.c.l.s4 1966171168
    %v624 = vunpack.c.0.s8 %v623
    %v625 = vlaneseq
    %v626 = vshrl.u32 %v625, 7
    %v627 = vsub.s32 %v624, %v626
    %v628 = vrot.slane %v614, %v627
    %v629 = vcombine.high %v621, %v621
    %v630 = vcombine.high %v628, %v628
    %v631 = vlaneseq
    %v632 = vshrl.u32 %v631, 7
    %v633 = vsub.s32 0, %v632
    %v634 = vrot.slane %v596, %v633
    %v635 = vlaneseq
    %v636 = vshrl.u32 %v635, 7
    %v637 = vsub.s32 0, %v636
    %v638 = vrot.slane %v603, %v637
    %v639 = vlaneseq
    %v640 = vshrl.u32 %v639, 7
    %v641 = vsub.s32 0, %v640
    %v642 = vrot.slane %v604, %v641
    %v643 = vlaneseq
    %v644 = vshrl.u32 %v643, 7
    %v645 = vsub.s32 0, %v644
    %v646 = vrot.slane %v605, %v645
    %v651 = vmul.f32 %v465, %v634
    %v652 = vmul.f32 %v465, %v638
    %v653 = vmul.f32 %v465, %v642
    %v654 = vmul.f32 %v465, %v646
    %655 = vmatprep.subr.mxu0 0.0
    %656 = vmatpush1.msra.mxu0 %v196
    %657 = vmatprep.subr.mxu0 0.0
    %658 = vmatpush1.msra.mxu0 %v197
    %659 = vmatprep.subr.mxu0 0.0
    %660 = vmatpush1.msra.mxu0 %v198
    %661 = vmatprep.subr.mxu0 0.0
    %662 = vmatpush1.msra.mxu0 %v199
    %663 = vmatprep.subr.mxu0 0.0
    %664 = vmatpush1.msra.mxu0 %v200
    %665 = vmatprep.subr.mxu0 0.0
    %666 = vmatpush1.msra.mxu0 %v201
    %667 = vmatprep.subr.mxu0 0.0
    %668 = vmatpush1.msra.mxu0 %v202
    %669 = vmatprep.subr.mxu0 0.0
    %670 = vmatpush1.msra.mxu0 %v203
    %671 = vmatprep.subr.mxu0 0.0
    %672 = vmatpush1.msra.mxu0 %v204
    %673 = vmatprep.subr.mxu0 0.0
    %674 = vmatpush1.msra.mxu0 %v205
    %675 = vmatprep.subr.mxu0 0.0
    %676 = vmatpush1.msra.mxu0 %v206
    %677 = vmatprep.subr.mxu0 0.0
    %678 = vmatpush1.msra.mxu0 %v207
    %679 = vmatprep.subr.mxu0 0.0
    %680 = vmatpush1.msra.mxu0 %v208
    %681 = vmatprep.subr.mxu0 0.0
    %682 = vmatpush1.msra.mxu0 %v209
    %683 = vmatprep.subr.mxu0 0.0
    %684 = vmatpush1.msra.mxu0 %v210
    %685 = vmatprep.subr.mxu0 0.0
    %686 = vmatpush1.msra.mxu0 %v211
    %687 = vmatprep.subr.mxu0 0.0
    %688 = vmatpush1.msra.mxu0 0.0
    %689 = vmatprep.subr.mxu0 0.0
    %690 = vmatpush1.msra.mxu0 0.0
    %691 = vmatprep.subr.mxu0 0.0
    %692 = vmatpush1.msra.mxu0 0.0
    %693 = vmatprep.subr.mxu0 0.0
    %694 = vmatpush1.msra.mxu0 0.0
    %695 = vmatprep.subr.mxu0 0.0
    %696 = vmatpush1.msra.mxu0 0.0
    %697 = vmatprep.subr.mxu0 0.0
    %698 = vmatpush1.msra.mxu0 0.0
    %699 = vmatprep.subr.mxu0 0.0
    %700 = vmatpush1.msra.mxu0 0.0
    %701 = vmatprep.subr.mxu0 0.0
    %702 = vmatpush1.msra.mxu0 0.0
    %703 = vmatprep.subr.mxu0 0.0
    %704 = vmatpush1.msra.mxu0 0.0
    %705 = vmatprep.subr.mxu0 0.0
    %706 = vmatpush1.msra.mxu0 0.0
    %707 = vmatprep.subr.mxu0 0.0
    %708 = vmatpush1.msra.mxu0 0.0
    %709 = vmatprep.subr.mxu0 0.0
    %710 = vmatpush1.msra.mxu0 0.0
    %711 = vmatprep.subr.mxu0 0.0
    %712 = vmatpush1.msra.mxu0 0.0
    %713 = vmatprep.subr.mxu0 0.0
    %714 = vmatpush1.msra.mxu0 0.0
    %715 = vmatprep.subr.mxu0 0.0
    %716 = vmatpush1.msra.mxu0 0.0
    %717 = vmatprep.subr.mxu0 0.0
    %718 = vmatpush1.msra.mxu0 0.0
    %719 = vmatprep.mubr.f32.mxu0 0.0
    %720 = vmatmul.mubr.f32.gmra.mrb[0].mxu0 %v651
    %v721 = vpop.f32.mrb[0].mxu0
    %v722 = vadd.f32 0.0, %v721
    %v723 = vpop.f32.mrb[0].mxu0
    %724 = vmatprep.mubr.f32.mxu0 0.0
    %725 = vmatmul.mubr.f32.gmra.mrb[0].mxu0 %v652
    %v726 = vpop.f32.mrb[0].mxu0
    %v727 = vadd.f32 0.0, %v726
    %v728 = vpop.f32.mrb[0].mxu0
    %729 = vmatprep.mubr.f32.mxu0 0.0
    %730 = vmatmul.mubr.f32.gmra.mrb[0].mxu0 %v653
    %v731 = vpop.f32.mrb[0].mxu0
    %v732 = vadd.f32 0.0, %v731
    %v733 = vpop.f32.mrb[0].mxu0
    %734 = vmatprep.mubr.f32.mxu0 0.0
    %735 = vmatmul.mubr.f32.gmra.mrb[0].mxu0 %v654
    %v736 = vpop.f32.mrb[0].mxu0
    %v737 = vadd.f32 0.0, %v736
    %v738 = vpop.f32.mrb[0].mxu0
    %739 = vdwg.mxu0
    %v740 = vmax.f32 %v722, %v727
    %v741 = vmax.f32 %v732, %v737
    %v742 = vmax.f32 %v740, %v741
    %v743 = vsub.f32 %v722, %v742
    %v744 = vsub.f32 %v727, %v742
    %v745 = vsub.f32 %v732, %v742
    %v746 = vsub.f32 %v737, %v742
    %v747 = vmul.f32 %v743, 1.442695
    %v748 = vpow.pop %v747
    %v749 = vmul.f32 %v744, 1.442695
    %v750 = vpow.pop %v749
    %v751 = vmul.f32 %v745, 1.442695
    %v752 = vpow.pop %v751
    %v753 = vmul.f32 %v746, 1.442695
    %v754 = vpow.pop %v753
    %v755 = vadd.f32 %v748, %v750
    %v756 = vadd.f32 %v755, %v752
    %v757 = vadd.f32 %v756, %v754
    %v758 = vrcp.pop %v757
    %v759 = vmul.f32 %v757, %v758
    %v760 = vsub.f32 2.0, %v759
    %v761 = vmul.f32 %v758, %v760
    %v762 = vmul.f32 %v748, %v761
    %v763 = vmul.f32 %v750, %v761
    %v764 = vmul.f32 %v752, %v761
    %v765 = vmul.f32 %v754, %v761
    %v766 = vlaneseq
    %v767 = vshrl.u32 %v766, 7
    %v768 = vsub.s32 0, %v767
    %v769 = vrot.slane %v621, %v768
    %v770 = vlaneseq
    %v771 = vshrl.u32 %v770, 7
    %v772 = vsub.s32 0, %v771
    %v773 = vrot.slane %v628, %v772
    %v774 = vlaneseq
    %v775 = vshrl.u32 %v774, 7
    %v776 = vsub.s32 0, %v775
    %v777 = vrot.slane %v629, %v776
    %v778 = vlaneseq
    %v779 = vshrl.u32 %v778, 7
    %v780 = vsub.s32 0, %v779
    %v781 = vrot.slane %v630, %v780
    %v786 = vmul.f32 %v762, %v769
    %v787 = vmul.f32 %v763, %v773
    %v788 = vmul.f32 %v764, %v777
    %v789 = vmul.f32 %v765, %v781
    %v790 = vadd.f32 %v786, %v787
    %v791 = vadd.f32 %v790, %v788
    %v792 = vadd.f32 %v791, %v789
    %v793 = vld [vmem:[#allocation13] sm:$0xff]
    %v794 = vld [vmem:[#allocation13 + $0x8] sm:$0xff]
    %v795 = vld [vmem:[#allocation13 + $0x10] sm:$0xff]
    %v796 = vld [vmem:[#allocation13 + $0x18] sm:$0xff]
    %v797 = vld [vmem:[#allocation13 + $0x20] sm:$0xff]
    %v798 = vld [vmem:[#allocation13 + $0x28] sm:$0xff]
    %v799 = vld [vmem:[#allocation13 + $0x30] sm:$0xff]
    %v800 = vld [vmem:[#allocation13 + $0x38] sm:$0xff]
    %v801 = vld [vmem:[#allocation13 + $0x40] sm:$0xff]
    %v802 = vld [vmem:[#allocation13 + $0x48] sm:$0xff]
    %v803 = vld [vmem:[#allocation13 + $0x50] sm:$0xff]
    %v804 = vld [vmem:[#allocation13 + $0x58] sm:$0xff]
    %v805 = vld [vmem:[#allocation13 + $0x60] sm:$0xff]
    %v806 = vld [vmem:[#allocation13 + $0x68] sm:$0xff]
    %v807 = vld [vmem:[#allocation13 + $0x70] sm:$0xff]
    %v808 = vld [vmem:[#allocation13 + $0x78] sm:$0xff]
    %v809 = vld [vmem:[%s11] sm:$0x1]
    %v811 = vlaneseq
    %v812 = vshrl.u32 %v811, 7
    %v813 = vsub.s32 0, %v812
    %v814 = vrot.slane %v809, %v813
    %816 = vmatprep.subr.mxu0 0.0
    %817 = vmatpush1.msra.mxu0 %v793
    %818 = vmatprep.subr.mxu0 0.0
    %819 = vmatpush1.msra.mxu0 %v794
    %820 = vmatprep.subr.mxu0 0.0
    %821 = vmatpush1.msra.mxu0 %v795
    %822 = vmatprep.subr.mxu0 0.0
    %823 = vmatpush1.msra.mxu0 %v796
    %824 = vmatprep.subr.mxu0 0.0
    %825 = vmatpush1.msra.mxu0 %v797
    %826 = vmatprep.subr.mxu0 0.0
    %827 = vmatpush1.msra.mxu0 %v798
    %828 = vmatprep.subr.mxu0 0.0
    %829 = vmatpush1.msra.mxu0 %v799
    %830 = vmatprep.subr.mxu0 0.0
    %831 = vmatpush1.msra.mxu0 %v800
    %832 = vmatprep.subr.mxu0 0.0
    %833 = vmatpush1.msra.mxu0 %v801
    %834 = vmatprep.subr.mxu0 0.0
    %835 = vmatpush1.msra.mxu0 %v802
    %836 = vmatprep.subr.mxu0 0.0
    %837 = vmatpush1.msra.mxu0 %v803
    %838 = vmatprep.subr.mxu0 0.0
    %839 = vmatpush1.msra.mxu0 %v804
    %840 = vmatprep.subr.mxu0 0.0
    %841 = vmatpush1.msra.mxu0 %v805
    %842 = vmatprep.subr.mxu0 0.0
    %843 = vmatpush1.msra.mxu0 %v806
    %844 = vmatprep.subr.mxu0 0.0
    %845 = vmatpush1.msra.mxu0 %v807
    %846 = vmatprep.subr.mxu0 0.0
    %847 = vmatpush1.msra.mxu0 %v808
    %848 = vmatprep.subr.mxu0 0.0
    %849 = vmatpush1.msra.mxu0 0.0
    %850 = vmatprep.subr.mxu0 0.0
    %851 = vmatpush1.msra.mxu0 0.0
    %852 = vmatprep.subr.mxu0 0.0
    %853 = vmatpush1.msra.mxu0 0.0
    %854 = vmatprep.subr.mxu0 0.0
    %855 = vmatpush1.msra.mxu0 0.0
    %856 = vmatprep.subr.mxu0 0.0
    %857 = vmatpush1.msra.mxu0 0.0
    %858 = vmatprep.subr.mxu0 0.0
    %859 = vmatpush1.msra.mxu0 0.0
    %860 = vmatprep.subr.mxu0 0.0
    %861 = vmatpush1.msra.mxu0 0.0
    %862 = vmatprep.subr.mxu0 0.0
    %863 = vmatpush1.msra.mxu0 0.0
    %864 = vmatprep.subr.mxu0 0.0
    %865 = vmatpush1.msra.mxu0 0.0
    %866 = vmatprep.subr.mxu0 0.0
    %867 = vmatpush1.msra.mxu0 0.0
    %868 = vmatprep.subr.mxu0 0.0
    %869 = vmatpush1.msra.mxu0 0.0
    %870 = vmatprep.subr.mxu0 0.0
    %871 = vmatpush1.msra.mxu0 0.0
    %872 = vmatprep.subr.mxu0 0.0
    %873 = vmatpush1.msra.mxu0 0.0
    %874 = vmatprep.subr.mxu0 0.0
    %875 = vmatpush1.msra.mxu0 0.0
    %876 = vmatprep.subr.mxu0 0.0
    %877 = vmatpush1.msra.mxu0 0.0
    %878 = vmatprep.subr.mxu0 0.0
    %879 = vmatpush1.msra.mxu0 0.0
    %880 = vmatprep.mubr.f32.mxu0 0.0
    %881 = vmatmul.mubr.f32.gmra.mrb[0].mxu0 %v792
    %v882 = vpop.f32.mrb[0].mxu0
    %v883 = vadd.f32 %v814, %v882
    %v884 = vpop.f32.mrb[0].mxu0
    %885 = vdwg.mxu0
    %v886 = vadd.f32 %v178, %v883
    %v887 = vld [vmem:[%s12] sm:$0x1]
    %v888 = vld [vmem:[%s13] sm:$0x1]
    %889 = vmatprep.subr.mxu0 0.0
    %890 = vmatpush1.msra.mxu0 %v180
    %891 = vmatprep.subr.mxu0 0.0
    %892 = vmatpush1.msra.mxu0 %v181
    %893 = vmatprep.subr.mxu0 0.0
    %894 = vmatpush1.msra.mxu0 %v182
    %895 = vmatprep.subr.mxu0 0.0
    %896 = vmatpush1.msra.mxu0 %v183
    %897 = vmatprep.subr.mxu0 0.0
    %898 = vmatpush1.msra.mxu0 %v184
    %899 = vmatprep.subr.mxu0 0.0
    %900 = vmatpush1.msra.mxu0 %v185
    %901 = vmatprep.subr.mxu0 0.0
    %902 = vmatpush1.msra.mxu0 %v186
    %903 = vmatprep.subr.mxu0 0.0
    %904 = vmatpush1.msra.mxu0 %v187
    %905 = vmatprep.subr.mxu0 0.0
    %906 = vmatpush1.msra.mxu0 %v188
    %907 = vmatprep.subr.mxu0 0.0
    %908 = vmatpush1.msra.mxu0 %v189
    %909 = vmatprep.subr.mxu0 0.0
    %910 = vmatpush1.msra.mxu0 %v190
    %911 = vmatprep.subr.mxu0 0.0
    %912 = vmatpush1.msra.mxu0 %v191
    %913 = vmatprep.subr.mxu0 0.0
    %914 = vmatpush1.msra.mxu0 %v192
    %915 = vmatprep.subr.mxu0 0.0
    %916 = vmatpush1.msra.mxu0 %v193
    %917 = vmatprep.subr.mxu0 0.0
    %918 = vmatpush1.msra.mxu0 %v194
    %919 = vmatprep.subr.mxu0 0.0
    %920 = vmatpush1.msra.mxu0 %v195
    %921 = vmatprep.subr.mxu0 0.0
    %922 = vmatpush1.msra.mxu0 0.0
    %923 = vmatprep.subr.mxu0 0.0
    %924 = vmatpush1.msra.mxu0 0.0
    %925 = vmatprep.subr.mxu0 0.0
    %926 = vmatpush1.msra.mxu0 0.0
    %927 = vmatprep.subr.mxu0 0.0
    %928 = vmatpush1.msra.mxu0 0.0
    %929 = vmatprep.subr.mxu0 0.0
    %930 = vmatpush1.msra.mxu0 0.0
    %931 = vmatprep.subr.mxu0 0.0
    %932 = vmatpush1.msra.mxu0 0.0
    %933 = vmatprep.subr.mxu0 0.0
    %934 = vmatpush1.msra.mxu0 0.0
    %935 = vmatprep.subr.mxu0 0.0
    %936 = vmatpush1.msra.mxu0 0.0
    %937 = vmatprep.subr.mxu0 0.0
    %938 = vmatpush1.msra.mxu0 0.0
    %939 = vmatprep.subr.mxu0 0.0
    %940 = vmatpush1.msra.mxu0 0.0
    %941 = vmatprep.subr.mxu0 0.0
    %942 = vmatpush1.msra.mxu0 0.0
    %943 = vmatprep.subr.mxu0 0.0
    %944 = vmatpush1.msra.mxu0 0.0
    %945 = vmatprep.subr.mxu0 0.0
    %946 = vmatpush1.msra.mxu0 0.0
    %947 = vmatprep.subr.mxu0 0.0
    %948 = vmatpush1.msra.mxu0 0.0
    %949 = vmatprep.subr.mxu0 0.0
    %950 = vmatpush1.msra.mxu0 0.0
    %951 = vmatprep.subr.mxu0 0.0
    %952 = vmatpush1.msra.mxu0 0.0
    %953 = vmatprep.mubr.f32.mxu0 0.0
    %954 = vmatmul.mubr.f32.gmra.mrb[0].mxu0 %v886
    %v955 = vpop.f32.mrb[0].mxu0
    %v956 = vadd.f32 0.0, %v955
    %v957 = vpop.f32.mrb[0].mxu0
    %958 = vdwg.mxu0
    %v959 = vsub.f32 %v886, %v956
    %v960 = vmul.f32 %v959, %v959
    %961 = vmatprep.subr.mxu0 0.0
    %962 = vmatpush1.msra.mxu0 %v180
    %963 = vmatprep.subr.mxu0 0.0
    %964 = vmatpush1.msra.mxu0 %v181
    %965 = vmatprep.subr.mxu0 0.0
    %966 = vmatpush1.msra.mxu0 %v182
    %967 = vmatprep.subr.mxu0 0.0
    %968 = vmatpush1.msra.mxu0 %v183
    %969 = vmatprep.subr.mxu0 0.0
    %970 = vmatpush1.msra.mxu0 %v184
    %971 = vmatprep.subr.mxu0 0.0
    %972 = vmatpush1.msra.mxu0 %v185
    %973 = vmatprep.subr.mxu0 0.0
    %974 = vmatpush1.msra.mxu0 %v186
    %975 = vmatprep.subr.mxu0 0.0
    %976 = vmatpush1.msra.mxu0 %v187
    %977 = vmatprep.subr.mxu0 0.0
    %978 = vmatpush1.msra.mxu0 %v188
    %979 = vmatprep.subr.mxu0 0.0
    %980 = vmatpush1.msra.mxu0 %v189
    %981 = vmatprep.subr.mxu0 0.0
    %982 = vmatpush1.msra.mxu0 %v190
    %983 = vmatprep.subr.mxu0 0.0
    %984 = vmatpush1.msra.mxu0 %v191
    %985 = vmatprep.subr.mxu0 0.0
    %986 = vmatpush1.msra.mxu0 %v192
    %987 = vmatprep.subr.mxu0 0.0
    %988 = vmatpush1.msra.mxu0 %v193
    %989 = vmatprep.subr.mxu0 0.0
    %990 = vmatpush1.msra.mxu0 %v194
    %991 = vmatprep.subr.mxu0 0.0
    %992 = vmatpush1.msra.mxu0 %v195
    %993 = vmatprep.subr.mxu0 0.0
    %994 = vmatpush1.msra.mxu0 0.0
    %995 = vmatprep.subr.mxu0 0.0
    %996 = vmatpush1.msra.mxu0 0.0
    %997 = vmatprep.subr.mxu0 0.0
    %998 = vmatpush1.msra.mxu0 0.0
    %999 = vmatprep.subr.mxu0 0.0
    %1000 = vmatpush1.msra.mxu0 0.0
    %1001 = vmatprep.subr.mxu0 0.0
    %1002 = vmatpush1.msra.mxu0 0.0
    %1003 = vmatprep.subr.mxu0 0.0
    %1004 = vmatpush1.msra.mxu0 0.0
    %1005 = vmatprep.subr.mxu0 0.0
    %1006 = vmatpush1.msra.mxu0 0.0
    %1007 = vmatprep.subr.mxu0 0.0
    %1008 = vmatpush1.msra.mxu0 0.0
    %1009 = vmatprep.subr.mxu0 0.0
    %1010 = vmatpush1.msra.mxu0 0.0
    %1011 = vmatprep.subr.mxu0 0.0
    %1012 = vmatpush1.msra.mxu0 0.0
    %1013 = vmatprep.subr.mxu0 0.0
    %1014 = vmatpush1.msra.mxu0 0.0
    %1015 = vmatprep.subr.mxu0 0.0
    %1016 = vmatpush1.msra.mxu0 0.0
    %1017 = vmatprep.subr.mxu0 0.0
    %1018 = vmatpush1.msra.mxu0 0.0
    %1019 = vmatprep.subr.mxu0 0.0
    %1020 = vmatpush1.msra.mxu0 0.0
    %1021 = vmatprep.subr.mxu0 0.0
    %1022 = vmatpush1.msra.mxu0 0.0
    %1023 = vmatprep.subr.mxu0 0.0
    %1024 = vmatpush1.msra.mxu0 0.0
    %1025 = vmatprep.mubr.f32.mxu0 0.0
    %1026 = vmatmul.mubr.f32.gmra.mrb[0].mxu0 %v960
    %v1027 = vpop.f32.mrb[0].mxu0
    %v1028 = vadd.f32 1e-05, %v1027
    %v1029 = vpop.f32.mrb[0].mxu0
    %1030 = vdwg.mxu0
    %v1031 = vrsqrt.pop %v1028
    %v1032 = vmul.f32 %v959, %v1031
    %v1034 = vlaneseq
    %v1035 = vshrl.u32 %v1034, 7
    %v1036 = vsub.s32 0, %v1035
    %v1037 = vrot.slane %v887, %v1036
    %v1039 = vmul.f32 %v1032, %v1037
    %v1041 = vlaneseq
    %v1042 = vshrl.u32 %v1041, 7
    %v1043 = vsub.s32 0, %v1042
    %v1044 = vrot.slane %v888, %v1043
    %v1046 = vadd.f32 %v1039, %v1044
    %v1047 = vld [vmem:[#allocation14] sm:$0xff]
    %v1048 = vld [vmem:[#allocation14 + $0x8] sm:$0xff]
    %v1049 = vld [vmem:[#allocation14 + $0x10] sm:$0xff]
    %v1050 = vld [vmem:[#allocation14 + $0x18] sm:$0xff]
    %v1051 = vld [vmem:[#allocation14 + $0x20] sm:$0xff]
    %v1052 = vld [vmem:[#allocation14 + $0x28] sm:$0xff]
    %v1053 = vld [vmem:[#allocation14 + $0x30] sm:$0xff]
    %v1054 = vld [vmem:[#allocation14 + $0x38] sm:$0xff]
    %v1055 = vld [vmem:[#allocation14 + $0x40] sm:$0xff]
    %v1056 = vld [vmem:[#allocation14 + $0x48] sm:$0xff]
    %v1057 = vld [vmem:[#allocation14 + $0x50] sm:$0xff]
    %v1058 = vld [vmem:[#allocation14 + $0x58] sm:$0xff]
    %v1059 = vld [vmem:[#allocation14 + $0x60] sm:$0xff]
    %v1060 = vld [vmem:[#allocation14 + $0x68] sm:$0xff]
    %v1061 = vld [vmem:[#allocation14 + $0x70] sm:$0xff]
    %v1062 = vld [vmem:[#allocation14 + $0x78] sm:$0xff]
    %v1063 = vld [vmem:[#allocation14 + $0x80] sm:$0xff]
    %v1064 = vld [vmem:[#allocation14 + $0x88] sm:$0xff]
    %v1065 = vld [vmem:[#allocation14 + $0x90] sm:$0xff]
    %v1066 = vld [vmem:[#allocation14 + $0x98] sm:$0xff]
    %v1067 = vld [vmem:[#allocation14 + $0xa0] sm:$0xff]
    %v1068 = vld [vmem:[#allocation14 + $0xa8] sm:$0xff]
    %v1069 = vld [vmem:[#allocation14 + $0xb0] sm:$0xff]
    %v1070 = vld [vmem:[#allocation14 + $0xb8] sm:$0xff]
    %v1071 = vld [vmem:[#allocation14 + $0xc0] sm:$0xff]
    %v1072 = vld [vmem:[#allocation14 + $0xc8] sm:$0xff]
    %v1073 = vld [vmem:[#allocation14 + $0xd0] sm:$0xff]
    %v1074 = vld [vmem:[#allocation14 + $0xd8] sm:$0xff]
    %v1075 = vld [vmem:[#allocation14 + $0xe0] sm:$0xff]
    %v1076 = vld [vmem:[#allocation14 + $0xe8] sm:$0xff]
    %v1077 = vld [vmem:[#allocation14 + $0xf0] sm:$0xff]
    %v1078 = vld [vmem:[#allocation14 + $0xf8] sm:$0xff]
    %v1079 = vld [vmem:[%s15] sm:$0x3]
    %v1081 = vlaneseq
    %v1082 = vshrl.u32 %v1081, 7
    %v1083 = vsub.s32 0, %v1082
    %v1084 = vrot.slane %v1079, %v1083
    %v1085 = vlaneseq
    %v1086 = vshrl.u32 %v1085, 7
    %v1087 = vsub.s32 1, %v1086
    %v1088 = vrot.slane %v1079, %v1087
    %1091 = vmatprep.subr.mxu0 %v1048
    %1092 = vmatpush1.msra.mxu0 %v1047
    %1093 = vmatprep.subr.mxu0 %v1050
    %1094 = vmatpush1.msra.mxu0 %v1049
    %1095 = vmatprep.subr.mxu0 %v1052
    %1096 = vmatpush1.msra.mxu0 %v1051
    %1097 = vmatprep.subr.mxu0 %v1054
    %1098 = vmatpush1.msra.mxu0 %v1053
    %1099 = vmatprep.subr.mxu0 %v1056
    %1100 = vmatpush1.msra.mxu0 %v1055
    %1101 = vmatprep.subr.mxu0 %v1058
    %1102 = vmatpush1.msra.mxu0 %v1057
    %1103 = vmatprep.subr.mxu0 %v1060
    %1104 = vmatpush1.msra.mxu0 %v1059
    %1105 = vmatprep.subr.mxu0 %v1062
    %1106 = vmatpush1.msra.mxu0 %v1061
    %1107 = vmatprep.subr.mxu0 %v1064
    %1108 = vmatpush1.msra.mxu0 %v1063
    %1109 = vmatprep.subr.mxu0 %v1066
    %1110 = vmatpush1.msra.mxu0 %v1065
    %1111 = vmatprep.subr.mxu0 %v1068
    %1112 = vmatpush1.msra.mxu0 %v1067
    %1113 = vmatprep.subr.mxu0 %v1070
    %1114 = vmatpush1.msra.mxu0 %v1069
    %1115 = vmatprep.subr.mxu0 %v1072
    %1116 = vmatpush1.msra.mxu0 %v1071
    %1117 = vmatprep.subr.mxu0 %v1074
    %1118 = vmatpush1.msra.mxu0 %v1073
    %1119 = vmatprep.subr.mxu0 %v1076
    %1120 = vmatpush1.msra.mxu0 %v1075
    %1121 = vmatprep.subr.mxu0 %v1078
    %1122 = vmatpush1.msra.mxu0 %v1077
    %1123 = vmatprep.subr.mxu0 0.0
    %1124 = vmatpush1.msra.mxu0 0.0
    %1125 = vmatprep.subr.mxu0 0.0
    %1126 = vmatpush1.msra.mxu0 0.0
    %1127 = vmatprep.subr.mxu0 0.0
    %1128 = vmatpush1.msra.mxu0 0.0
    %1129 = vmatprep.subr.mxu0 0.0
    %1130 = vmatpush1.msra.mxu0 0.0
    %1131 = vmatprep.subr.mxu0 0.0
    %1132 = vmatpush1.msra.mxu0 0.0
    %1133 = vmatprep.subr.mxu0 0.0
    %1134 = vmatpush1.msra.mxu0 0.0
    %1135 = vmatprep.subr.mxu0 0.0
    %1136 = vmatpush1.msra.mxu0 0.0
    %1137 = vmatprep.subr.mxu0 0.0
    %1138 = vmatpush1.msra.mxu0 0.0
    %1139 = vmatprep.subr.mxu0 0.0
    %1140 = vmatpush1.msra.mxu0 0.0
    %1141 = vmatprep.subr.mxu0 0.0
    %1142 = vmatpush1.msra.mxu0 0.0
    %1143 = vmatprep.subr.mxu0 0.0
    %1144 = vmatpush1.msra.mxu0 0.0
    %1145 = vmatprep.subr.mxu0 0.0
    %1146 = vmatpush1.msra.mxu0 0.0
    %1147 = vmatprep.subr.mxu0 0.0
    %1148 = vmatpush1.msra.mxu0 0.0
    %1149 = vmatprep.subr.mxu0 0.0
    %1150 = vmatpush1.msra.mxu0 0.0
    %1151 = vmatprep.subr.mxu0 0.0
    %1152 = vmatpush1.msra.mxu0 0.0
    %1153 = vmatprep.subr.mxu0 0.0
    %1154 = vmatpush1.msra.mxu0 0.0
    %1155 = vmatprep.mubr.f32.mxu0 0.0
    %1156 = vmatmul.mubr.f32.gmra.mrb[0].mxu0 %v1046
    %v1157 = vpop.f32.mrb[0].mxu0
    %v1158 = vadd.f32 %v1084, %v1157
    %v1159 = vpop.f32.mrb[0].mxu0
    %v1160 = vadd.f32 %v1088, %v1159
    %1161 = vdwg.mxu0
    %v1162 = vmul.f32 %v1158, 0.5
    %v1163 = vmul.f32 %v1160, 0.5
    %v1164 = vmul.f32 %v1158, 0.70710677
    %v1165 = vmul.f32 %v1160, 0.70710677
    %v1166 = verf.f32.pop %v1164
    %v1167 = verf.f32.pop %v1165
    %v1168 = vadd.f32 %v1166, 1.0
    %v1169 = vadd.f32 %v1167, 1.0
    %v1170 = vmul.f32 %v1162, %v1168
    %v1171 = vmul.f32 %v1163, %v1169
    %v1172 = vld [vmem:[#allocation16] sm:$0xff]
    %v1173 = vld [vmem:[#allocation16 + $0x8] sm:$0xff]
    %v1174 = vld [vmem:[#allocation16 + $0x10] sm:$0xff]
    %v1175 = vld [vmem:[#allocation16 + $0x18] sm:$0xff]
    %v1176 = vld [vmem:[#allocation16 + $0x20] sm:$0xff]
    %v1177 = vld [vmem:[#allocation16 + $0x28] sm:$0xff]
    %v1178 = vld [vmem:[#allocation16 + $0x30] sm:$0xff]
    %v1179 = vld [vmem:[#allocation16 + $0x38] sm:$0xff]
    %v1180 = vld [vmem:[#allocation16 + $0x40] sm:$0xff]
    %v1181 = vld [vmem:[#allocation16 + $0x48] sm:$0xff]
    %v1182 = vld [vmem:[#allocation16 + $0x50] sm:$0xff]
    %v1183 = vld [vmem:[#allocation16 + $0x58] sm:$0xff]
    %v1184 = vld [vmem:[#allocation16 + $0x60] sm:$0xff]
    %v1185 = vld [vmem:[#allocation16 + $0x68] sm:$0xff]
    %v1186 = vld [vmem:[#allocation16 + $0x70] sm:$0xff]
    %v1187 = vld [vmem:[#allocation16 + $0x78] sm:$0xff]
    %v1188 = vld [vmem:[#allocation16 + $0x80] sm:$0xff]
    %v1189 = vld [vmem:[#allocation16 + $0x88] sm:$0xff]
    %v1190 = vld [vmem:[#allocation16 + $0x90] sm:$0xff]
    %v1191 = vld [vmem:[#allocation16 + $0x98] sm:$0xff]
    %v1192 = vld [vmem:[#allocation16 + $0xa0] sm:$0xff]
    %v1193 = vld [vmem:[#allocation16 + $0xa8] sm:$0xff]
    %v1194 = vld [vmem:[#allocation16 + $0xb0] sm:$0xff]
    %v1195 = vld [vmem:[#allocation16 + $0xb8] sm:$0xff]
    %v1196 = vld [vmem:[#allocation16 + $0xc0] sm:$0xff]
    %v1197 = vld [vmem:[#allocation16 + $0xc8] sm:$0xff]
    %v1198 = vld [vmem:[#allocation16 + $0xd0] sm:$0xff]
    %v1199 = vld [vmem:[#allocation16 + $0xd8] sm:$0xff]
    %v1200 = vld [vmem:[#allocation16 + $0xe0] sm:$0xff]
    %v1201 = vld [vmem:[#allocation16 + $0xe8] sm:$0xff]
    %v1202 = vld [vmem:[#allocation16 + $0xf0] sm:$0xff]
    %v1203 = vld [vmem:[#allocation16 + $0xf8] sm:$0xff]
    %v1204 = vld [vmem:[%s17] sm:$0x1]
    %v1206 = vlaneseq
    %v1207 = vshrl.u32 %v1206, 7
    %v1208 = vsub.s32 0, %v1207
    %v1209 = vrot.slane %v1204, %v1208
    %1211 = vmatprep.subr.mxu0 0.0
    %1212 = vmatpush1.msra.mxu0 %v1172
    %1213 = vmatprep.subr.mxu0 0.0
    %1214 = vmatpush1.msra.mxu0 %v1173
    %1215 = vmatprep.subr.mxu0 0.0
    %1216 = vmatpush1.msra.mxu0 %v1174
    %1217 = vmatprep.subr.mxu0 0.0
    %1218 = vmatpush1.msra.mxu0 %v1175
    %1219 = vmatprep.subr.mxu0 0.0
    %1220 = vmatpush1.msra.mxu0 %v1176
    %1221 = vmatprep.subr.mxu0 0.0
    %1222 = vmatpush1.msra.mxu0 %v1177
    %1223 = vmatprep.subr.mxu0 0.0
    %1224 = vmatpush1.msra.mxu0 %v1178
    %1225 = vmatprep.subr.mxu0 0.0
    %1226 = vmatpush1.msra.mxu0 %v1179
    %1227 = vmatprep.subr.mxu0 0.0
    %1228 = vmatpush1.msra.mxu0 %v1180
    %1229 = vmatprep.subr.mxu0 0.0
    %1230 = vmatpush1.msra.mxu0 %v1181
    %1231 = vmatprep.subr.mxu0 0.0
    %1232 = vmatpush1.msra.mxu0 %v1182
    %1233 = vmatprep.subr.mxu0 0.0
    %1234 = vmatpush1.msra.mxu0 %v1183
    %1235 = vmatprep.subr.mxu0 0.0
    %1236 = vmatpush1.msra.mxu0 %v1184
    %1237 = vmatprep.subr.mxu0 0.0
    %1238 = vmatpush1.msra.mxu0 %v1185
    %1239 = vmatprep.subr.mxu0 0.0
    %1240 = vmatpush1.msra.mxu0 %v1186
    %1241 = vmatprep.subr.mxu0 0.0
    %1242 = vmatpush1.msra.mxu0 %v1187
    %1243 = vmatprep.subr.mxu0 0.0
    %1244 = vmatpush1.msra.mxu0 %v1188
    %1245 = vmatprep.subr.mxu0 0.0
    %1246 = vmatpush1.msra.mxu0 %v1189
    %1247 = vmatprep.subr.mxu0 0.0
    %1248 = vmatpush1.msra.mxu0 %v1190
    %1249 = vmatprep.subr.mxu0 0.0
    %1250 = vmatpush1.msra.mxu0 %v1191
    %1251 = vmatprep.subr.mxu0 0.0
    %1252 = vmatpush1.msra.mxu0 %v1192
    %1253 = vmatprep.subr.mxu0 0.0
    %1254 = vmatpush1.msra.mxu0 %v1193
    %1255 = vmatprep.subr.mxu0 0.0
    %1256 = vmatpush1.msra.mxu0 %v1194
    %1257 = vmatprep.subr.mxu0 0.0
    %1258 = vmatpush1.msra.mxu0 %v1195
    %1259 = vmatprep.subr.mxu0 0.0
    %1260 = vmatpush1.msra.mxu0 %v1196
    %1261 = vmatprep.subr.mxu0 0.0
    %1262 = vmatpush1.msra.mxu0 %v1197
    %1263 = vmatprep.subr.mxu0 0.0
    %1264 = vmatpush1.msra.mxu0 %v1198
    %1265 = vmatprep.subr.mxu0 0.0
    %1266 = vmatpush1.msra.mxu0 %v1199
    %1267 = vmatprep.subr.mxu0 0.0
    %1268 = vmatpush1.msra.mxu0 %v1200
    %1269 = vmatprep.subr.mxu0 0.0
    %1270 = vmatpush1.msra.mxu0 %v1201
    %1271 = vmatprep.subr.mxu0 0.0
    %1272 = vmatpush1.msra.mxu0 %v1202
    %1273 = vmatprep.subr.mxu0 0.0
    %1274 = vmatpush1.msra.mxu0 %v1203
    %1275 = vmatprep.mubr.f32.mxu0 %v1171
    %1276 = vmatmul.mubr.f32.gmra.mrb[0].mxu0 %v1170
    %v1277 = vpop.f32.mrb[0].mxu0
    %v1278 = vadd.f32 %v1209, %v1277
    %v1279 = vpop.f32.mrb[0].mxu0
    %1280 = vdwg.mxu0
    %v1281 = vadd.f32 %v886, %v1278
    %1282 = vst [vmem:[#allocation17] sm:$0xff] %v1281
    // Predicated region
    $region110: #{tpu_custom_call.1} parent=1 // pred_check
      _
    $region111: #{tpu_custom_call.1} parent=1 // pred_check_branch
      %1284 = sbr.rel (0) target = $region113
    $region112: #{tpu_custom_call.1} parent=1 // pred_region
      %s1286 = ssub.s32 128, 128
      %1287 = vsyncadd [#allocation4], %s1286
      %s1289 = sshll.u32 [#allocation17], 4
      %s1290 = int_to_ptr.vmem [resolvable:$true] %s1289
      %1292 = dma.vmem_to_hbm [thread:$0]  %s1290, 128, %s18, [#allocation4]
    $region113: #{tpu_custom_call.1} parent=1 // pred_fallthru
      _
    // Predicated region
    $region114: #{tpu_custom_call.1} parent=1 // pred_check
      _
    $region115: #{tpu_custom_call.1} parent=1 // pred_check_branch
      %1294 = sbr.rel (0) target = $region117
    $region116: #{tpu_custom_call.1} parent=1 // pred_region
      %1295 = dma.done [#allocation4], 128
    $region117: #{tpu_custom_call.1} parent=1 // pred_fallthru
      _
    %1296 = vsyncpa [#allocation3], 1
    %1297 = vsyncpa [#allocation6], 1
    %1298 = vsyncpa [#allocation9], 1
    %1299 = vsyncpa [#allocation12], 1
    %1300 = vsyncpa [#allocation15], 1
    %1301 = vsyncpa [#allocation4], 1

</llo_original>
